<compile_context>
chip_gen: v7x
topology: tpu7x:2x2x1
jax: 0.10.0
libtpu: 0.0.40
codegen_flags: <defaults>
</compile_context>

<pallas_src>
import functools
import math

import jax
import jax.numpy as jnp
from jax.experimental import pallas as pl
from jax.experimental.pallas import tpu as pltpu


_NEG_BIG = -1.0e30            # -inf surrogate (python float so kernels do not capture jnp consts)
_LOG2E = 1.4426950408889634   # log2(e); attention scores live in the exp2 domain inside the kernel


# ----------------------------- in-kernel helpers -----------------------------

def _ln_rows(x, gamma, beta, eps):
    # PyTorch LayerNorm (biased variance), f32 math.
    mean = jnp.mean(x, axis=-1, keepdims=True)
    xc = x - mean
    var = jnp.mean(xc * xc, axis=-1, keepdims=True)
    return xc * jax.lax.rsqrt(var + eps) * gamma + beta


def _erf_approx(x, approx):
    # Abramowitz & Stegun 7.1.26, |abs err| <= 1.5e-7; the divide is routed to the EUP.
    a1, a2, a3, a4, a5 = 0.254829592, -0.284496736, 1.421413741, -1.453152027, 1.061405429
    p = 0.3275911
    s = jnp.where(x >= 0.0, 1.0, -1.0)
    ax = jnp.abs(x)
    t = pl.reciprocal(1.0 + p * ax, approx=approx)
    poly = ((((a5 * t + a4) * t + a3) * t + a2) * t + a1) * t
    return s * (1.0 - poly * jnp.exp(-ax * ax))


def _gelu_exact(x, approx=False):
    # matches torch.nn.functional.gelu (exact, erf-based) to ~1e-6 abs (approx=False).
    return 0.5 * x * (1.0 + _erf_approx(x * (1.0 / math.sqrt(2.0)), approx))


# ------------------------------- Pallas kernels -------------------------------

def _qkv_kernel(x_ref, g1_ref, be1_ref, wq_ref, wk_ref, wv_ref, bq_ref, bk_ref, bv_ref,
                q_ref, k_ref, v_ref, *, eps, mxu_dtype, num_heads, q_scale):
    """LayerNorm1 + Q/K/V projections, emitted head-major (H, rows, dh); Q pre-scaled."""
    x = x_ref[0]                                              # (tr, D) f32
    tr, D = x.shape
    dh = D // num_heads
    n = _ln_rows(x, g1_ref[...], be1_ref[...], eps).astype(mxu_dtype)
    q = jnp.dot(n, wq_ref[...], preferred_element_type=jnp.float32) + bq_ref[...]
    k = jnp.dot(n, wk_ref[...], preferred_element_type=jnp.float32) + bk_ref[...]
    v = jnp.dot(n, wv_ref[...], preferred_element_type=jnp.float32) + bv_ref[...]
    q = q * q_scale                                           # fold 1/sqrt(dh) * log2(e) into Q
    q_ref[0] = jnp.transpose(q.reshape(tr, num_heads, dh), (1, 0, 2)).astype(mxu_dtype)
    k_ref[0] = jnp.transpose(k.reshape(tr, num_heads, dh), (1, 0, 2)).astype(mxu_dtype)
    v_ref[0] = jnp.transpose(v.reshape(tr, num_heads, dh), (1, 0, 2)).astype(mxu_dtype)


def _attn_kernel(*refs, has_attn_mask, is_causal, mxu_dtype, tq, tk, approx_recip):
    """Head-batched flash attention (exp2 domain) + output projection + residual.

    Grid: (B, num_q_tiles, num_kv_tiles); kv axis is 'arbitrary' (sequential accumulation).
    """
    if has_attn_mask:
        (res_ref, q_ref, k_ref, v_ref, kbias_ref, wo_ref, bo_ref, amask_ref,
         o_ref, m_sc, l_sc, acc_sc) = refs
    else:
        (res_ref, q_ref, k_ref, v_ref, kbias_ref, wo_ref, bo_ref,
         o_ref, m_sc, l_sc, acc_sc) = refs
        amask_ref = None

    qi = pl.program_id(1)
    ki = pl.program_id(2)
    H, _, dh = acc_sc.shape

    # ---- init flash state for this q-tile ----
    @pl.when(ki == 0)
    def _init():
        m_sc[...] = jnp.full_like(m_sc, _NEG_BIG)
        l_sc[...] = jnp.zeros_like(l_sc)
        acc_sc[...] = jnp.zeros_like(acc_sc)

    # ---- process one KV tile ----
    def _process(apply_causal):
        q = q_ref[0]                                          # (H, tq, dh) pre-scaled, mxu dtype
        k = k_ref[0]                                          # (H, tk, dh)
        v = v_ref[0]                                          # (H, tk, dh)
        # head-batched q @ k^T (single MXU push chain, no per-head python loop).
        s = jax.lax.dot_general(q, k, (((2,), (2,)), ((0,), (0,))),
                                preferred_element_type=jnp.float32)       # (H, tq, tk)
        s = s + kbias_ref[0]                                  # (1, tk) key-padding bias, broadcast
        if has_attn_mask:
            s = s + amask_ref[...]                            # (tq, tk), broadcast over heads
        if apply_causal:
            rows = qi * tq + jax.lax.broadcasted_iota(jnp.int32, (tq, tk), 0)
            cols = ki * tk + jax.lax.broadcasted_iota(jnp.int32, (tq, tk), 1)
            s = jnp.where((cols > rows)[None, :, :], _NEG_BIG, s)

        m_prev = m_sc[...]                                    # (H, tq, 1)
        m_new = jnp.maximum(m_prev, jnp.max(s, axis=-1, keepdims=True))
        alpha = jnp.exp2(m_prev - m_new)                      # scores are already * log2(e)
        p = jnp.exp2(s - m_new)
        l_sc[...] = alpha * l_sc[...] + jnp.sum(p, axis=-1, keepdims=True)
        pv = jax.lax.dot_general(p.astype(mxu_dtype), v, (((2,), (1,)), ((0,), (0,))),
                                 preferred_element_type=jnp.float32)      # (H, tq, dh)
        acc_sc[...] = alpha * acc_sc[...] + pv
        m_sc[...] = m_new

    if is_causal:
        live = ki * tk <= qi * tq + (tq - 1)                  # tile has >=1 unmasked position
        crosses = ki * tk + (tk - 1) > qi * tq                # tile straddles the diagonal
        # Only diagonal-crossing tiles pay the iota/compare/select causal mask.
        pl.when(jnp.logical_and(live, crosses))(lambda: _process(True))
        pl.when(jnp.logical_and(live, jnp.logical_not(crosses)))(lambda: _process(False))
    else:
        _process(False)

    # ---- finalize: normalize, output projection, residual add ----
    @pl.when(ki == pl.num_programs(2) - 1)
    def _finalize():
        inv_l = pl.reciprocal(l_sc[...], approx=approx_recip)             # (H, tq, 1)
        ctx = acc_sc[...] * inv_l                                         # (H, tq, dh)
        ctx = jnp.transpose(ctx, (1, 0, 2)).reshape(tq, H * dh).astype(mxu_dtype)
        attn = jnp.dot(ctx, wo_ref[...], preferred_element_type=jnp.float32) + bo_ref[...]
        o_ref[0] = res_ref[0] + attn                          # residual (dropout1 = identity)


def _ffn_kernel(y_ref, g2_ref, be2_ref, w1_ref, b1_ref, w2_ref, b2_ref, o_ref, n_sc, acc_sc,
                *, eps, mxu_dtype, approx_recip):
    """LN2 + Linear1 + GELU + Linear2 + residual; hidden dim tiled along grid axis 1."""
    fi = pl.program_id(1)

    @pl.when(fi == 0)
    def _init():
        n_sc[...] = _ln_rows(y_ref[...], g2_ref[...], be2_ref[...], eps).astype(mxu_dtype)
        acc_sc[...] = jnp.zeros_like(acc_sc)

    h = jnp.dot(n_sc[...], w1_ref[...], preferred_element_type=jnp.float32) + b1_ref[...]
    h = _gelu_exact(h, approx=approx_recip)                   # f32 elementwise, divide on EUP
    acc_sc[...] = acc_sc[...] + jnp.dot(h.astype(mxu_dtype), w2_ref[...],
                                        preferred_element_type=jnp.float32)

    @pl.when(fi == pl.num_programs(1) - 1)
    def _fin():
        o_ref[...] = y_ref[...] + acc_sc[...] + b2_ref[...]   # residual (dropout2 = identity)


# --------------------------------- wrappers ----------------------------------

def _pick_block(total, pref, align):
    """Largest tile <= pref that divides `total` and respects TPU (8,128) alignment."""
    if total <= pref:
        return total
    cand = (pref // align) * align
    while cand >= align:
        if total % cand == 0:
            return cand
        cand -= align
    # TODO(synk): pad ragged extents to a tile multiple (masked edge tiles) instead of one block.
    return total


def _const_spec(shape):
    """Full-extent block with a constant index_map; single-buffered (the block never changes)."""
    zeros = (0,) * len(shape)
    index_map = lambda *_: zeros
    buffered = getattr(pl, "Buffered", None)
    if buffered is not None:
        try:
            return pl.BlockSpec(shape, index_map, pipeline_mode=buffered(1))
        except TypeError:
            pass
    return pl.BlockSpec(shape, index_map)


def qkv_projection(memory, gamma1, beta1, wqT, wkT, wvT, bq, bk, bv, *,
                   num_heads, eps, mxu_dtype, block_rows=256, vmem_limit=64 * 1024 * 1024):
    B, S, D = memory.shape
    dh = D // num_heads
    tr = _pick_block(S, block_rows, 8)
    q_scale = (1.0 / math.sqrt(dh)) * _LOG2E

    kernel = functools.partial(_qkv_kernel, eps=eps, mxu_dtype=mxu_dtype,
                               num_heads=num_heads, q_scale=q_scale)
    out_sds = jax.ShapeDtypeStruct((B, num_heads, S, dh), mxu_dtype)
    qkv_spec = pl.BlockSpec((1, num_heads, tr, dh), lambda b, i: (b, 0, i, 0))

    return pl.pallas_call(
        kernel,
        out_shape=(out_sds, out_sds, out_sds),
        grid=(B, S // tr),
        in_specs=[pl.BlockSpec((1, tr, D), lambda b, i: (b, i, 0)),
                  _const_spec((1, D)), _const_spec((1, D)),           # LN1 gamma/beta
                  _const_spec((D, D)), _const_spec((D, D)), _const_spec((D, D)),  # wqT/wkT/wvT
                  _const_spec((1, D)), _const_spec((1, D)), _const_spec((1, D))], # bq/bk/bv
        out_specs=(qkv_spec, qkv_spec, qkv_spec),
        compiler_params=pltpu.CompilerParams(
            dimension_semantics=("parallel", "parallel"),
            vmem_limit_bytes=vmem_limit),
    )(memory, gamma1.reshape(1, D), beta1.reshape(1, D), wqT, wkT, wvT,
      bq.reshape(1, D), bk.reshape(1, D), bv.reshape(1, D))


def flash_attention(memory, q, k, v, key_bias, woT, bo, attn_mask, *,
                    is_causal, mxu_dtype, approx_recip, q_block=512, kv_block=512,
                    vmem_limit=64 * 1024 * 1024):
    B, S, D = memory.shape
    H, dh = q.shape[1], q.shape[3]
    tq = _pick_block(S, q_block, 8)
    tk = _pick_block(S, kv_block, 128)
    nq, nk = S // tq, S // tk

    if is_causal:
        # Clamp dead (entirely above-diagonal) KV tiles to the last live tile: the block index
        # then does not change across those steps, so no DMA is issued for them, and pl.when
        # skips their compute.
        def _kv_idx(qi, ki):
            return jnp.minimum(ki, (qi * tq + tq - 1) // tk)
    else:
        def _kv_idx(qi, ki):
            return ki

    in_specs = [
        pl.BlockSpec((1, tq, D), lambda b, qi, ki: (b, qi, 0)),                    # residual rows
        pl.BlockSpec((1, H, tq, dh), lambda b, qi, ki: (b, 0, qi, 0)),             # q (resident)
        pl.BlockSpec((1, H, tk, dh), lambda b, qi, ki: (b, 0, _kv_idx(qi, ki), 0)),  # k
        pl.BlockSpec((1, H, tk, dh), lambda b, qi, ki: (b, 0, _kv_idx(qi, ki), 0)),  # v
        pl.BlockSpec((1, 1, tk), lambda b, qi, ki: (b, 0, _kv_idx(qi, ki))),       # key-pad bias
        _const_spec((D, D)),                                                       # woT
        _const_spec((1, D)),                                                       # bo
    ]
    args = [memory, q, k, v, key_bias, woT, bo.reshape(1, D)]

    has_attn_mask = attn_mask is not None
    if has_attn_mask:
        in_specs.append(pl.BlockSpec((tq, tk), lambda b, qi, ki: (qi, _kv_idx(qi, ki))))
        args.append(attn_mask)

    kernel = functools.partial(_attn_kernel, has_attn_mask=has_attn_mask, is_causal=is_causal,
                               mxu_dtype=mxu_dtype, tq=tq, tk=tk, approx_recip=approx_recip)

    return pl.pallas_call(
        kernel,
        out_shape=jax.ShapeDtypeStruct((B, S, D), jnp.float32),
        grid=(B, nq, nk),
        in_specs=in_specs,
        out_specs=pl.BlockSpec((1, tq, D), lambda b, qi, ki: (b, qi, 0)),
        scratch_shapes=[pltpu.VMEM((H, tq, 1), jnp.float32),   # running max (log2 domain)
                        pltpu.VMEM((H, tq, 1), jnp.float32),   # running softmax denom
                        pltpu.VMEM((H, tq, dh), jnp.float32)], # context accumulator
        compiler_params=pltpu.CompilerParams(
            dimension_semantics=("parallel", "parallel", "arbitrary"),
            vmem_limit_bytes=vmem_limit),
    )(*args)


def fused_ffn(y, gamma2, beta2, w1T, b1, w2T, b2, *, eps, mxu_dtype, approx_recip,
              block_rows=256, ff_block=512, vmem_limit=64 * 1024 * 1024):
    B, S, D = y.shape
    N = B * S
    F = w1T.shape[1]
    tr = _pick_block(N, block_rows, 8)
    tf = _pick_block(F, ff_block, 128)
    y2 = y.reshape(N, D)

    out = pl.pallas_call(
        functools.partial(_ffn_kernel, eps=eps, mxu_dtype=mxu_dtype, approx_recip=approx_recip),
        out_shape=jax.ShapeDtypeStruct((N, D), jnp.float32),
        grid=(N // tr, F // tf),
        in_specs=[pl.BlockSpec((tr, D), lambda i, fi: (i, 0)),
                  _const_spec((1, D)), _const_spec((1, D)),              # LN2 gamma/beta
                  pl.BlockSpec((D, tf), lambda i, fi: (0, fi)),          # w1T K-tile
                  pl.BlockSpec((1, tf), lambda i, fi: (0, fi)),          # b1 K-tile
                  pl.BlockSpec((tf, D), lambda i, fi: (fi, 0)),          # w2T K-tile
                  _const_spec((1, D))],                                  # b2
        out_specs=pl.BlockSpec((tr, D), lambda i, fi: (i, 0)),
        scratch_shapes=[pltpu.VMEM((tr, D), mxu_dtype),   # cached LN2 output
                        pltpu.VMEM((tr, D), jnp.float32)],  # FFN accumulator
        compiler_params=pltpu.CompilerParams(
            dimension_semantics=("parallel", "arbitrary"),
            vmem_limit_bytes=vmem_limit),
    )(y2, gamma2.reshape(1, D), beta2.reshape(1, D), w1T, b1.reshape(1, F),
      w2T, b2.reshape(1, D))
    return out.reshape(B, S, D)


def mortm_encoder_layer(memory, params, attn_mask=None, src_key_padding_mask=None,
                        is_causal=True, mxu_dtype=jnp.bfloat16, approx_recip=True,
                        vmem_limit=64 * 1024 * 1024):
    B, S, D = memory.shape
    eps = params["eps"]
    H = params["num_heads"]
    assert D % H == 0

    # Host-side layout plumbing: (out,in) -> (in,out) transpose + MXU dtype cast, done once.
    wqT = params["wq"].T.astype(mxu_dtype)
    wkT = params["wk"].T.astype(mxu_dtype)
    wvT = params["wv"].T.astype(mxu_dtype)
    woT = params["wo"].T.astype(mxu_dtype)
    w1T = params["w1"].T.astype(mxu_dtype)
    w2T = params["w2"].T.astype(mxu_dtype)

    # Tiny (B,1,S) additive key-padding bias instead of a (B,S,S) mask tensor.
    if src_key_padding_mask is not None:
        key_bias = jnp.where(src_key_padding_mask, _NEG_BIG, 0.0).astype(jnp.float32)
        key_bias = key_bias.reshape(B, 1, S)
    else:
        key_bias = jnp.zeros((B, 1, S), jnp.float32)

    amask = None
    if attn_mask is not None:
        assert attn_mask.shape == (S, S)
        if attn_mask.dtype == jnp.bool_:
            amask = jnp.where(attn_mask, _NEG_BIG, 0.0).astype(jnp.float32)
        else:
            # float additive mask: kernel scores live in the exp2 domain -> scale by log2(e).
            amask = attn_mask.astype(jnp.float32) * _LOG2E

    # Kernel A: LN1 + QKV projection (once per layer), head-major bf16 outputs, Q pre-scaled.
    q, k, v = qkv_projection(memory, params["norm1_w"], params["norm1_b"],
                             wqT, wkT, wvT, params["bq"], params["bk"], params["bv"],
                             num_heads=H, eps=eps, mxu_dtype=mxu_dtype, vmem_limit=vmem_limit)

    # Kernel B: y = memory + SelfAttn(LN1(memory))
    y1 = flash_attention(memory, q, k, v, key_bias, woT, params["bo"], amask,
                         is_causal=is_causal, mxu_dtype=mxu_dtype,
                         approx_recip=approx_recip, vmem_limit=vmem_limit)

    # Kernel C: out = y + FFN(LN2(y))
    out = fused_ffn(y1, params["norm2_w"], params["norm2_b"],
                    w1T, params["b1"], w2T, params["b2"],
                    eps=eps, mxu_dtype=mxu_dtype, approx_recip=approx_recip,
                    vmem_limit=vmem_limit)
    return out


# ---------------------------- pure-JAX reference ------------------------------

def _reference_attn_bias(B, S, is_causal, attn_mask, key_padding_mask):
    bias = jnp.zeros((B, S, S), jnp.float32)
    if is_causal:
        causal = jnp.triu(jnp.ones((S, S), jnp.bool_), k=1)
        bias = bias + jnp.where(causal, -1e30, 0.0)[None, :, :]
    if attn_mask is not None:
        am = attn_mask
        if am.dtype == jnp.bool_:
            am = jnp.where(am, -1e30, 0.0)
        bias = bias + am.astype(jnp.float32)[None, :, :]
    if key_padding_mask is not None:
        bias = bias + jnp.where(key_padding_mask[:, None, :], -1e30, 0.0)
    return bias


def reference_forward(memory, p, attn_mask=None, src_key_padding_mask=None, is_causal=True):
    B, S, D = memory.shape
    H = p["num_heads"]; dh = D // H
    eps = p["eps"]
    bias = _reference_attn_bias(B, S, is_causal, attn_mask, src_key_padding_mask)

    def ln(x, w, b):
        m = jnp.mean(x, -1, keepdims=True)
        v = jnp.mean((x - m) ** 2, -1, keepdims=True)
        return (x - m) * jax.lax.rsqrt(v + eps) * w + b

    y = memory
    n1 = ln(y, p["norm1_w"], p["norm1_b"])
    q = n1 @ p["wq"].T + p["bq"]
    k = n1 @ p["wk"].T + p["bk"]
    v = n1 @ p["wv"].T + p["bv"]
    q = q.reshape(B, S, H, dh).transpose(0, 2, 1, 3)
    k = k.reshape(B, S, H, dh).transpose(0, 2, 1, 3)
    v = v.reshape(B, S, H, dh).transpose(0, 2, 1, 3)
    s = jnp.einsum("bhqd,bhkd->bhqk", q, k) / math.sqrt(dh) + bias[:, None, :, :]
    a = jax.nn.softmax(s, axis=-1)
    ctx = jnp.einsum("bhqk,bhkd->bhqd", a, v).transpose(0, 2, 1, 3).reshape(B, S, D)
    y = y + (ctx @ p["wo"].T + p["bo"])

    n2 = ln(y, p["norm2_w"], p["norm2_b"])
    h = jax.nn.gelu(n2 @ p["w1"].T + p["b1"], approximate=False)
    return y + (h @ p["w2"].T + p["b2"])


# ------------------------------------ main ------------------------------------

if __name__ == "__main__":
    B, S, D, H, FF = 2, 8, 32, 4, 64
    eps = 1e-5

    key = jax.random.PRNGKey(0)
    ks = jax.random.split(key, 17)
    f32 = jnp.float32

    params = {
        "num_heads": H,
        "eps": eps,
        "norm1_w": 1.0 + 0.1 * jax.random.normal(ks[0], (D,), f32),
        "norm1_b": 0.1 * jax.random.normal(ks[1], (D,), f32),
        "norm2_w": 1.0 + 0.1 * jax.random.normal(ks[2], (D,), f32),
        "norm2_b": 0.1 * jax.random.normal(ks[3], (D,), f32),
        "wq": 0.05 * jax.random.normal(ks[4], (D, D), f32),
        "wk": 0.05 * jax.random.normal(ks[5], (D, D), f32),
        "wv": 0.05 * jax.random.normal(ks[6], (D, D), f32),
        "bq": 0.05 * jax.random.normal(ks[7], (D,), f32),
        "bk": 0.05 * jax.random.normal(ks[8], (D,), f32),
        "bv": 0.05 * jax.random.normal(ks[9], (D,), f32),
        "wo": 0.05 * jax.random.normal(ks[10], (D, D), f32),
        "bo": 0.05 * jax.random.normal(ks[11], (D,), f32),
        "w1": 0.05 * jax.random.normal(ks[12], (FF, D), f32),   # ff_linear  (dim_ff, d_model)
        "b1": 0.05 * jax.random.normal(ks[13], (FF,), f32),
        "w2": 0.05 * jax.random.normal(ks[14], (D, FF), f32),   # ff_linear2 (d_model, dim_ff)
        "b2": 0.05 * jax.random.normal(ks[15], (D,), f32),
    }

    memory = jax.random.normal(ks[16], (B, S, D), f32)

    # --- causal, no masks: strict f32 structural check (exact reciprocal) ---
    ref = reference_forward(memory, params, attn_mask=None,
                            src_key_padding_mask=None, is_causal=True)
    out_f32 = mortm_encoder_layer(memory, params, attn_mask=None,
                                  src_key_padding_mask=None, is_causal=True,
                                  mxu_dtype=jnp.float32, approx_recip=False)
    out_f32 = jax.block_until_ready(out_f32)
    assert out_f32.shape == (B, S, D) and out_f32.dtype == jnp.float32
    assert jnp.allclose(out_f32, ref, rtol=3e-3, atol=2e-3), \
        f"f32 max abs diff = {float(jnp.max(jnp.abs(out_f32 - ref)))}"

    # --- causal + key-padding mask, f32 path ---
    kpm = jnp.zeros((B, S), jnp.bool_).at[:, S - 2:].set(True)
    ref_kpm = reference_forward(memory, params, attn_mask=None,
                                src_key_padding_mask=kpm, is_causal=True)
    out_kpm = mortm_encoder_layer(memory, params, attn_mask=None,
                                  src_key_padding_mask=kpm, is_causal=True,
                                  mxu_dtype=jnp.float32, approx_recip=False)
    out_kpm = jax.block_until_ready(out_kpm)
    assert jnp.allclose(out_kpm, ref_kpm, rtol=3e-3, atol=2e-3), \
        f"key-padding max abs diff = {float(jnp.max(jnp.abs(out_kpm - ref_kpm)))}"

    # --- production path: bf16 MXU operands, f32 accumulation, approx reciprocal ---
    out_bf16 = mortm_encoder_layer(memory, params, attn_mask=None,
                                   src_key_padding_mask=None, is_causal=True,
                                   mxu_dtype=jnp.bfloat16, approx_recip=True)
    out_bf16 = jax.block_until_ready(out_bf16)
    assert out_bf16.shape == (B, S, D) and out_bf16.dtype == jnp.float32
    assert jnp.allclose(out_bf16, ref, rtol=2e-2, atol=2e-2), \
        f"bf16 max abs diff = {float(jnp.max(jnp.abs(out_bf16 - ref)))}"

    print("KERNEL_OK")
</pallas_src>

<mosaic_0001>
module attributes {stable_mosaic.version = 11 : i64} {
  func.func @_qkv_kernel(%arg0: i32, %arg1: i32, %arg2: memref<1x8x32xf32, #tpu.memory_space<vmem>>, %arg3: memref<1x32xf32, #tpu.memory_space<vmem>>, %arg4: memref<1x32xf32, #tpu.memory_space<vmem>>, %arg5: memref<32x32xf32, #tpu.memory_space<vmem>>, %arg6: memref<32x32xf32, #tpu.memory_space<vmem>>, %arg7: memref<32x32xf32, #tpu.memory_space<vmem>>, %arg8: memref<1x32xf32, #tpu.memory_space<vmem>>, %arg9: memref<1x32xf32, #tpu.memory_space<vmem>>, %arg10: memref<1x32xf32, #tpu.memory_space<vmem>>, %arg11: memref<1x4x8x8xf32, #tpu.memory_space<vmem>>, %arg12: memref<1x4x8x8xf32, #tpu.memory_space<vmem>>, %arg13: memref<1x4x8x8xf32, #tpu.memory_space<vmem>>) attributes {dimension_semantics = [#tpu.dimension_semantics<parallel>, #tpu.dimension_semantics<parallel>], iteration_bounds = array<i64: 2, 1>, scalar_prefetch = 0 : i64, scratch_operands = 0 : i64, tpu.core_type = #tpu.core_type<tc>, window_params = [{transform_indices = @transform_0, window_bounds = array<i64: 1, 8, 32>}, {pipeline_mode = #tpu.pipeline_mode<synchronous>, transform_indices = @transform_1, window_bounds = array<i64: 1, 32>}, {pipeline_mode = #tpu.pipeline_mode<synchronous>, transform_indices = @transform_2, window_bounds = array<i64: 1, 32>}, {pipeline_mode = #tpu.pipeline_mode<synchronous>, transform_indices = @transform_3, window_bounds = array<i64: 32, 32>}, {pipeline_mode = #tpu.pipeline_mode<synchronous>, transform_indices = @transform_4, window_bounds = array<i64: 32, 32>}, {pipeline_mode = #tpu.pipeline_mode<synchronous>, transform_indices = @transform_5, window_bounds = array<i64: 32, 32>}, {pipeline_mode = #tpu.pipeline_mode<synchronous>, transform_indices = @transform_6, window_bounds = array<i64: 1, 32>}, {pipeline_mode = #tpu.pipeline_mode<synchronous>, transform_indices = @transform_7, window_bounds = array<i64: 1, 32>}, {pipeline_mode = #tpu.pipeline_mode<synchronous>, transform_indices = @transform_8, window_bounds = array<i64: 1, 32>}, {transform_indices = @transform_9, window_bounds = array<i64: 1, 4, 8, 8>}, {transform_indices = @transform_10, window_bounds = array<i64: 1, 4, 8, 8>}, {transform_indices = @transform_11, window_bounds = array<i64: 1, 4, 8, 8>}]} {
    %c0 = arith.constant 0 : index
    %c0_0 = arith.constant 0 : index
    %c0_1 = arith.constant 0 : index
    %0 = vector.load %arg2[%c0, %c0_0, %c0_1] : memref<1x8x32xf32, #tpu.memory_space<vmem>>, vector<1x8x32xf32>
    %1 = vector.shape_cast %0 : vector<1x8x32xf32> to vector<8x32xf32>
    %c0_2 = arith.constant 0 : index
    %c0_3 = arith.constant 0 : index
    %2 = vector.load %arg3[%c0_2, %c0_3] : memref<1x32xf32, #tpu.memory_space<vmem>>, vector<1x32xf32>
    %c0_4 = arith.constant 0 : index
    %c0_5 = arith.constant 0 : index
    %3 = vector.load %arg4[%c0_4, %c0_5] : memref<1x32xf32, #tpu.memory_space<vmem>>, vector<1x32xf32>
    %cst = arith.constant dense<0.000000e+00> : vector<8xf32>
    %4 = vector.multi_reduction <add>, %1, %cst [1] : vector<8x32xf32> to vector<8xf32>
    %5 = vector.shape_cast %4 : vector<8xf32> to vector<8x1xf32>
    %cst_6 = arith.constant 3.200000e+01 : f32
    %6 = vector.broadcast %cst_6 : f32 to vector<8x1xf32>
    %7 = arith.divf %5, %6 : vector<8x1xf32>
    %8 = vector.broadcast %7 : vector<8x1xf32> to vector<8x32xf32>
    %9 = arith.subf %1, %8 : vector<8x32xf32>
    %10 = arith.mulf %9, %9 : vector<8x32xf32>
    %cst_7 = arith.constant dense<0.000000e+00> : vector<8xf32>
    %11 = vector.multi_reduction <add>, %10, %cst_7 [1] : vector<8x32xf32> to vector<8xf32>
    %12 = vector.shape_cast %11 : vector<8xf32> to vector<8x1xf32>
    %cst_8 = arith.constant 3.200000e+01 : f32
    %13 = vector.broadcast %cst_8 : f32 to vector<8x1xf32>
    %14 = arith.divf %12, %13 : vector<8x1xf32>
    %cst_9 = arith.constant 9.99999974E-6 : f32
    %15 = vector.broadcast %cst_9 : f32 to vector<8x1xf32>
    %16 = arith.addf %14, %15 : vector<8x1xf32>
    %17 = math.rsqrt %16 : vector<8x1xf32>
    %18 = vector.broadcast %17 : vector<8x1xf32> to vector<8x32xf32>
    %19 = arith.mulf %9, %18 : vector<8x32xf32>
    %20 = vector.broadcast %2 : vector<1x32xf32> to vector<8x32xf32>
    %21 = arith.mulf %19, %20 : vector<8x32xf32>
    %22 = vector.broadcast %3 : vector<1x32xf32> to vector<8x32xf32>
    %23 = arith.addf %21, %22 : vector<8x32xf32>
    %c0_10 = arith.constant 0 : index
    %c0_11 = arith.constant 0 : index
    %24 = vector.load %arg5[%c0_10, %c0_11] : memref<32x32xf32, #tpu.memory_space<vmem>>, vector<32x32xf32>
    %cst_12 = arith.constant dense<0.000000e+00> : vector<8x32xf32>
    %25 = tpu.matmul %23, %24, %cst_12 {dimension_numbers = #tpu.dot_dimension_numbers<[1], [0], [0], [1], [0, 0, 1, 1], [], []>} : vector<8x32xf32>, vector<32x32xf32>, vector<8x32xf32> -> vector<8x32xf32>
    %c0_13 = arith.constant 0 : index
    %c0_14 = arith.constant 0 : index
    %26 = vector.load %arg8[%c0_13, %c0_14] : memref<1x32xf32, #tpu.memory_space<vmem>>, vector<1x32xf32>
    %27 = vector.broadcast %26 : vector<1x32xf32> to vector<8x32xf32>
    %28 = arith.addf %25, %27 : vector<8x32xf32>
    %c0_15 = arith.constant 0 : index
    %c0_16 = arith.constant 0 : index
    %29 = vector.load %arg6[%c0_15, %c0_16] : memref<32x32xf32, #tpu.memory_space<vmem>>, vector<32x32xf32>
    %cst_17 = arith.constant dense<0.000000e+00> : vector<8x32xf32>
    %30 = tpu.matmul %23, %29, %cst_17 {dimension_numbers = #tpu.dot_dimension_numbers<[1], [0], [0], [1], [0, 0, 1, 1], [], []>} : vector<8x32xf32>, vector<32x32xf32>, vector<8x32xf32> -> vector<8x32xf32>
    %c0_18 = arith.constant 0 : index
    %c0_19 = arith.constant 0 : index
    %31 = vector.load %arg9[%c0_18, %c0_19] : memref<1x32xf32, #tpu.memory_space<vmem>>, vector<1x32xf32>
    %32 = vector.broadcast %31 : vector<1x32xf32> to vector<8x32xf32>
    %33 = arith.addf %30, %32 : vector<8x32xf32>
    %c0_20 = arith.constant 0 : index
    %c0_21 = arith.constant 0 : index
    %34 = vector.load %arg7[%c0_20, %c0_21] : memref<32x32xf32, #tpu.memory_space<vmem>>, vector<32x32xf32>
    %cst_22 = arith.constant dense<0.000000e+00> : vector<8x32xf32>
    %35 = tpu.matmul %23, %34, %cst_22 {dimension_numbers = #tpu.dot_dimension_numbers<[1], [0], [0], [1], [0, 0, 1, 1], [], []>} : vector<8x32xf32>, vector<32x32xf32>, vector<8x32xf32> -> vector<8x32xf32>
    %c0_23 = arith.constant 0 : index
    %c0_24 = arith.constant 0 : index
    %36 = vector.load %arg10[%c0_23, %c0_24] : memref<1x32xf32, #tpu.memory_space<vmem>>, vector<1x32xf32>
    %37 = vector.broadcast %36 : vector<1x32xf32> to vector<8x32xf32>
    %38 = arith.addf %35, %37 : vector<8x32xf32>
    %cst_25 = arith.constant 0.510069728 : f32
    %39 = vector.broadcast %cst_25 : f32 to vector<8x32xf32>
    %40 = arith.mulf %28, %39 : vector<8x32xf32>
    %41 = vector.shape_cast %40 : vector<8x32xf32> to vector<8x4x8xf32>
    %42 = tpu.transpose %41, [1, 0, 2] : vector<8x4x8xf32> -> vector<4x8x8xf32>
    %c0_26 = arith.constant 0 : index
    %c0_27 = arith.constant 0 : index
    %c0_28 = arith.constant 0 : index
    %c0_29 = arith.constant 0 : index
    %43 = vector.load %arg11[%c0_26, %c0_27, %c0_28, %c0_29] : memref<1x4x8x8xf32, #tpu.memory_space<vmem>>, vector<1x4x8x8xf32>
    %44 = vector.shape_cast %43 : vector<1x4x8x8xf32> to vector<4x8x8xf32>
    %45 = vector.shape_cast %42 : vector<4x8x8xf32> to vector<1x4x8x8xf32>
    tpu.vector_store %arg11[%c0_26, %c0_27, %c0_28, %c0_29], %45 {strides = array<i32>} : memref<1x4x8x8xf32, #tpu.memory_space<vmem>>, vector<1x4x8x8xf32>,
    %46 = vector.shape_cast %33 : vector<8x32xf32> to vector<8x4x8xf32>
    %47 = tpu.transpose %46, [1, 0, 2] : vector<8x4x8xf32> -> vector<4x8x8xf32>
    %c0_30 = arith.constant 0 : index
    %c0_31 = arith.constant 0 : index
    %c0_32 = arith.constant 0 : index
    %c0_33 = arith.constant 0 : index
    %48 = vector.load %arg12[%c0_30, %c0_31, %c0_32, %c0_33] : memref<1x4x8x8xf32, #tpu.memory_space<vmem>>, vector<1x4x8x8xf32>
    %49 = vector.shape_cast %48 : vector<1x4x8x8xf32> to vector<4x8x8xf32>
    %50 = vector.shape_cast %47 : vector<4x8x8xf32> to vector<1x4x8x8xf32>
    tpu.vector_store %arg12[%c0_30, %c0_31, %c0_32, %c0_33], %50 {strides = array<i32>} : memref<1x4x8x8xf32, #tpu.memory_space<vmem>>, vector<1x4x8x8xf32>,
    %51 = vector.shape_cast %38 : vector<8x32xf32> to vector<8x4x8xf32>
    %52 = tpu.transpose %51, [1, 0, 2] : vector<8x4x8xf32> -> vector<4x8x8xf32>
    %c0_34 = arith.constant 0 : index
    %c0_35 = arith.constant 0 : index
    %c0_36 = arith.constant 0 : index
    %c0_37 = arith.constant 0 : index
    %53 = vector.load %arg13[%c0_34, %c0_35, %c0_36, %c0_37] : memref<1x4x8x8xf32, #tpu.memory_space<vmem>>, vector<1x4x8x8xf32>
    %54 = vector.shape_cast %53 : vector<1x4x8x8xf32> to vector<4x8x8xf32>
    %55 = vector.shape_cast %52 : vector<4x8x8xf32> to vector<1x4x8x8xf32>
    tpu.vector_store %arg13[%c0_34, %c0_35, %c0_36, %c0_37], %55 {strides = array<i32>} : memref<1x4x8x8xf32, #tpu.memory_space<vmem>>, vector<1x4x8x8xf32>,
    return
  }
  func.func @transform_0(%arg0: i32, %arg1: i32) -> (i32, i32, i32) {
    %c0_i32 = arith.constant 0 : i32
    %c0_i32_0 = arith.constant 0 : i32
    return %arg0, %arg1, %c0_i32 : i32, i32, i32
  }
  func.func @transform_1(%arg0: i32, %arg1: i32) -> (i32, i32) {
    %c0_i32 = arith.constant 0 : i32
    %c0_i32_0 = arith.constant 0 : i32
    %c0_i32_1 = arith.constant 0 : i32
    return %c0_i32, %c0_i32_0 : i32, i32
  }
  func.func @transform_2(%arg0: i32, %arg1: i32) -> (i32, i32) {
    %c0_i32 = arith.constant 0 : i32
    %c0_i32_0 = arith.constant 0 : i32
    %c0_i32_1 = arith.constant 0 : i32
    return %c0_i32, %c0_i32_0 : i32, i32
  }
  func.func @transform_3(%arg0: i32, %arg1: i32) -> (i32, i32) {
    %c0_i32 = arith.constant 0 : i32
    %c0_i32_0 = arith.constant 0 : i32
    %c0_i32_1 = arith.constant 0 : i32
    return %c0_i32, %c0_i32_0 : i32, i32
  }
  func.func @transform_4(%arg0: i32, %arg1: i32) -> (i32, i32) {
    %c0_i32 = arith.constant 0 : i32
    %c0_i32_0 = arith.constant 0 : i32
    %c0_i32_1 = arith.constant 0 : i32
    return %c0_i32, %c0_i32_0 : i32, i32
  }
  func.func @transform_5(%arg0: i32, %arg1: i32) -> (i32, i32) {
    %c0_i32 = arith.constant 0 : i32
    %c0_i32_0 = arith.constant 0 : i32
    %c0_i32_1 = arith.constant 0 : i32
    return %c0_i32, %c0_i32_0 : i32, i32
  }
  func.func @transform_6(%arg0: i32, %arg1: i32) -> (i32, i32) {
    %c0_i32 = arith.constant 0 : i32
    %c0_i32_0 = arith.constant 0 : i32
    %c0_i32_1 = arith.constant 0 : i32
    return %c0_i32, %c0_i32_0 : i32, i32
  }
  func.func @transform_7(%arg0: i32, %arg1: i32) -> (i32, i32) {
    %c0_i32 = arith.constant 0 : i32
    %c0_i32_0 = arith.constant 0 : i32
    %c0_i32_1 = arith.constant 0 : i32
    return %c0_i32, %c0_i32_0 : i32, i32
  }
  func.func @transform_8(%arg0: i32, %arg1: i32) -> (i32, i32) {
    %c0_i32 = arith.constant 0 : i32
    %c0_i32_0 = arith.constant 0 : i32
    %c0_i32_1 = arith.constant 0 : i32
    return %c0_i32, %c0_i32_0 : i32, i32
  }
  func.func @transform_9(%arg0: i32, %arg1: i32) -> (i32, i32, i32, i32) {
    %c0_i32 = arith.constant 0 : i32
    %c0_i32_0 = arith.constant 0 : i32
    %c0_i32_1 = arith.constant 0 : i32
    return %arg0, %c0_i32, %arg1, %c0_i32_0 : i32, i32, i32, i32
  }
  func.func @transform_10(%arg0: i32, %arg1: i32) -> (i32, i32, i32, i32) {
    %c0_i32 = arith.constant 0 : i32
    %c0_i32_0 = arith.constant 0 : i32
    %c0_i32_1 = arith.constant 0 : i32
    return %arg0, %c0_i32, %arg1, %c0_i32_0 : i32, i32, i32, i32
  }
  func.func @transform_11(%arg0: i32, %arg1: i32) -> (i32, i32, i32, i32) {
    %c0_i32 = arith.constant 0 : i32
    %c0_i32_0 = arith.constant 0 : i32
    %c0_i32_1 = arith.constant 0 : i32
    return %arg0, %c0_i32, %arg1, %c0_i32_0 : i32, i32, i32, i32
  }
}

</mosaic_0001>

<llo_original>
// kernel: tpu_custom_call.1
$region0: #{tpu_custom_call.1}
  #allocation0 [shape = 'u32[]', space=smem, size = 0x4, offset = 0x4, fixed_abs, tag = 'smem constant byte address 0x4 - core index']
  #allocation1 [shape = 'u32[144,128]{1,0:T(1,128)}', space=vmem, size = 0x12000, scoped, tag = 'internal scratch']
  %s0 = inlined_call_operand.hbm [shape: f32[2,8,32], index: 0, kind: input, shape index: {}]
  %s1 = inlined_call_operand.hbm [shape: f32[1,32], index: 1, kind: input, shape index: {}]
  %s2 = inlined_call_operand.hbm [shape: f32[1,32], index: 2, kind: input, shape index: {}]
  %s3 = inlined_call_operand.hbm [shape: f32[32,32], index: 3, kind: input, shape index: {}]
  %s4 = inlined_call_operand.hbm [shape: f32[32,32], index: 4, kind: input, shape index: {}]
  %s5 = inlined_call_operand.hbm [shape: f32[32,32], index: 5, kind: input, shape index: {}]
  %s6 = inlined_call_operand.hbm [shape: f32[1,32], index: 6, kind: input, shape index: {}]
  %s7 = inlined_call_operand.hbm [shape: f32[1,32], index: 7, kind: input, shape index: {}]
  %s8 = inlined_call_operand.hbm [shape: f32[1,32], index: 8, kind: input, shape index: {}]
  %s9 = inlined_call_operand.hbm [shape: f32[2,4,8,8], index: 9, kind: output, shape index: {0}]
  %s10 = inlined_call_operand.hbm [shape: f32[2,4,8,8], index: 10, kind: output, shape index: {1}]
  %s11 = inlined_call_operand.hbm [shape: f32[2,4,8,8], index: 11, kind: output, shape index: {2}]
  %12 = xla_tuple %s9, %s10, %s11
  %s13 = sld [smem:[#allocation0]]
  $region121: #{tpu_custom_call.1} parent=0
    _
  %s15 = ssub.s32 1, %s13
  %s16 = scalar_select 0, %s15, %s13
  $region1: #{tpu_custom_call.1} parent=0
    #allocation2 [shape = 'u8[8192]{0}', space=vmem, size = 0x2000, scoped, tag = 'input window, operand 0']
    #allocation3 [shape = 's32[2]{0}', space=sflag, size = 0x8, scoped, tag = 'scoped memory for tpu_custom_call.1']
    #allocation4 [shape = 's32[2]{0}', space=sflag, size = 0x8, scoped, tag = 'scoped memory for tpu_custom_call.1']
    #allocation5 [shape = 'u8[512]{0}', space=vmem, size = 0x400, scoped, tag = 'input window, operand 1, single buffered']
    #allocation6 [shape = 's32[1]{0}', space=sflag, size = 0x4, scoped, tag = 'scoped memory for tpu_custom_call.1']
    #allocation7 [shape = 'u8[512]{0}', space=vmem, size = 0x400, scoped, tag = 'input window, operand 2, single buffered']
    #allocation8 [shape = 'u8[16384]{0}', space=vmem, size = 0x4000, scoped, tag = 'input window, operand 3, single buffered']
    #allocation9 [shape = 's32[1]{0}', space=sflag, size = 0x4, scoped, tag = 'scoped memory for tpu_custom_call.1']
    #allocation10 [shape = 'u8[16384]{0}', space=vmem, size = 0x4000, scoped, tag = 'input window, operand 4, single buffered']
    #allocation11 [shape = 'u8[16384]{0}', space=vmem, size = 0x4000, scoped, tag = 'input window, operand 5, single buffered']
    #allocation12 [shape = 's32[1]{0}', space=sflag, size = 0x4, scoped, tag = 'scoped memory for tpu_custom_call.1']
    #allocation13 [shape = 'u8[512]{0}', space=vmem, size = 0x400, scoped, tag = 'input window, operand 6, single buffered']
    #allocation14 [shape = 'u8[512]{0}', space=vmem, size = 0x400, scoped, tag = 'input window, operand 7, single buffered']
    #allocation15 [shape = 's32[1]{0}', space=sflag, size = 0x4, scoped, tag = 'scoped memory for tpu_custom_call.1']
    #allocation16 [shape = 'u8[512]{0}', space=vmem, size = 0x400, scoped, tag = 'input window, operand 8, single buffered']
    #allocation17 [shape = 'u8[32768]{0}', space=vmem, size = 0x8000, scoped, tag = 'output window, operand 0']
    #allocation18 [shape = 'u8[32768]{0}', space=vmem, size = 0x8000, scoped, tag = 'output window, operand 1']
    #allocation19 [shape = 's32[2]{0}', space=sflag, size = 0x8, scoped, tag = 'scoped memory for tpu_custom_call.1']
    #allocation20 [shape = 'u8[32768]{0}', space=vmem, size = 0x8000, scoped, tag = 'output window, operand 2']
    %17 = vsyncpa [#allocation3], 0
    %s18 = scalar_lea.sflag [#allocation3], 1
    %19 = vsyncpa %s18, 0
    %20 = vsyncpa [#allocation6], 0
    %21 = vsyncpa [#allocation9], 0
    %22 = vsyncpa [#allocation12], 0
    %23 = vsyncpa [#allocation15], 0
    %24 = vsyncpa [#allocation4], 0
    %s25 = scalar_lea.sflag [#allocation4], 1
    %26 = vsyncpa %s25, 0
    %27 = vsyncpa [#allocation19], 0
    %s28 = scalar_lea.sflag [#allocation19], 1
    %29 = vsyncpa %s28, 0
    loop: start=0, step=1, limit=4
    $region2: #{tpu_custom_call.1} parent=1 // loop_pre_header
      _
    $region3: #{tpu_custom_call.1} parent=1 // loop_header
      %s31 = sphi 0, %s35
      %p32 = scmp.ge.s32.totalorder %s31, 4
      %s38 = sphi 0, %s50
      %s39 = sphi 0, %s46
      %s40 = sphi 0, %s38
      %s41 = sphi 0, %s39
      %s42 = sphi 0, %s40
      %s43 = sphi 0, %s41
      %s55 = sphi 0, %s57
      %s58 = sphi 0, %s55
      %s59 = sphi 0, %s58
      %s75 = sphi 0, %s59
      %s79 = sphi 0, %s79
      %s81 = sphi 0, %s79
      %s82 = sphi 0, %s81
      %s96 = sphi 0, %s82
      %s100 = sphi 0, %s100
      %s102 = sphi 0, %s100
      %s103 = sphi 0, %s102
      %s117 = sphi 0, %s103
      %s121 = sphi 0, %s121
      %s123 = sphi 0, %s121
      %s124 = sphi 0, %s123
      %s138 = sphi 0, %s124
      %s142 = sphi 0, %s142
      %s144 = sphi 0, %s142
      %s145 = sphi 0, %s144
      %s159 = sphi 0, %s145
      %s163 = sphi 0, %s163
      %s165 = sphi 0, %s163
      %s166 = sphi 0, %s165
      %s180 = sphi 0, %s166
      %s184 = sphi 0, %s184
      %s186 = sphi 0, %s184
      %s187 = sphi 0, %s186
      %s201 = sphi 0, %s187
      %s205 = sphi 0, %s205
      %s207 = sphi 0, %s205
      %s208 = sphi 0, %s207
      %s222 = sphi 0, %s208
      %s226 = sphi 0, %s226
      %s228 = sphi 0, %s226
      %s229 = sphi 0, %s228
      %s243 = sphi 0, %s229
      %s251 = sphi 0, %s253
      %s254 = sphi 0, %s251
      %s255 = sphi 0, %s254
      %s271 = sphi 0, %s255
      %s279 = sphi 0, %s281
      %s282 = sphi 0, %s279
      %s283 = sphi 0, %s282
      %s299 = sphi 0, %s283
      %s307 = sphi 0, %s309
      %s310 = sphi 0, %s307
      %s311 = sphi 0, %s310
      %s327 = sphi 0, %s311
    $region4: #{tpu_custom_call.1} parent=1 // loop_header_branch
      %34 = sbr.rel (%p32) target = $region8
    $region5: #{tpu_custom_call.1} parent=1 // loop_body
      %s36 = ssub.s32 %s31, 1
      %s37 = ssub.s32 %s31, 2
      %s44 = sadd.s32 1, %s39
      %p45 = scmp.ge.s32.totalorder %s44, 1
      %s46 = scalar_select %p45, 0, %s44
      %s47 = sadd.s32 1, %s38
      %s48 = scalar_select %p45, %s47, %s38
      %p49 = scmp.ge.s32.totalorder %s48, 2
      %s50 = scalar_select %p49, 0, %s48
      %s51 = ssub.s32 %s38, %s50
      %s52 = ssub.s32 %s39, %s46
      %s53 = sor.u32 %s51, %s52
      %p54 = scmp.eq.s32.totalorder %s53, 0
      %s56 = sadd.s32 %s55, 1
      %s57 = scalar_select %p54, %s55, %s56
      %p60 = pneg %p54
      %p61 = scmp.eq.s32.totalorder %s31, 1
      %p62 = por %p60, %p61
      %p63 = scmp.ne.s32.totalorder %s55, %s58
      %p64 = scmp.eq.s32.totalorder %s31, 0
      %p65 = por %p63, %p64
      %p66 = scmp.ne.s32.totalorder %s55, %s58
      %p67 = scmp.eq.s32.totalorder %s36, 1
      %p68 = por %p66, %p67
      %p69 = scmp.ne.s32.totalorder %s58, %s59
      %p70 = scmp.eq.s32.totalorder %s36, 0
      %p71 = por %p69, %p70
      %p72 = scmp.ne.s32.totalorder %s58, %s59
      %p73 = scmp.eq.s32.totalorder %s37, 1
      %p74 = por %p72, %p73
      %p76 = scmp.ne.s32.totalorder %s59, %s75
      %p77 = scmp.eq.s32.totalorder %s37, 0
      %p78 = por %p76, %p77
      %s80 = sadd.s32 %s79, 1
      %p83 = scmp.eq.s32.totalorder %s31, 1
      %p84 = scmp.ne.s32.totalorder %s79, %s81
      %p85 = scmp.eq.s32.totalorder %s31, 0
      %p86 = por %p84, %p85
      %p87 = scmp.ne.s32.totalorder %s79, %s81
      %p88 = scmp.eq.s32.totalorder %s36, 1
      %p89 = por %p87, %p88
      %p90 = scmp.ne.s32.totalorder %s81, %s82
      %p91 = scmp.eq.s32.totalorder %s36, 0
      %p92 = por %p90, %p91
      %p93 = scmp.ne.s32.totalorder %s81, %s82
      %p94 = scmp.eq.s32.totalorder %s37, 1
      %p95 = por %p93, %p94
      %p97 = scmp.ne.s32.totalorder %s82, %s96
      %p98 = scmp.eq.s32.totalorder %s37, 0
      %p99 = por %p97, %p98
      %s101 = sadd.s32 %s100, 1
      %p104 = scmp.eq.s32.totalorder %s31, 1
      %p105 = scmp.ne.s32.totalorder %s100, %s102
      %p106 = scmp.eq.s32.totalorder %s31, 0
      %p107 = por %p105, %p106
      %p108 = scmp.ne.s32.totalorder %s100, %s102
      %p109 = scmp.eq.s32.totalorder %s36, 1
      %p110 = por %p108, %p109
      %p111 = scmp.ne.s32.totalorder %s102, %s103
      %p112 = scmp.eq.s32.totalorder %s36, 0
      %p113 = por %p111, %p112
      %p114 = scmp.ne.s32.totalorder %s102, %s103
      %p115 = scmp.eq.s32.totalorder %s37, 1
      %p116 = por %p114, %p115
      %p118 = scmp.ne.s32.totalorder %s103, %s117
      %p119 = scmp.eq.s32.totalorder %s37, 0
      %p120 = por %p118, %p119
      %s122 = sadd.s32 %s121, 1
      %p125 = scmp.eq.s32.totalorder %s31, 1
      %p126 = scmp.ne.s32.totalorder %s121, %s123
      %p127 = scmp.eq.s32.totalorder %s31, 0
      %p128 = por %p126, %p127
      %p129 = scmp.ne.s32.totalorder %s121, %s123
      %p130 = scmp.eq.s32.totalorder %s36, 1
      %p131 = por %p129, %p130
      %p132 = scmp.ne.s32.totalorder %s123, %s124
      %p133 = scmp.eq.s32.totalorder %s36, 0
      %p134 = por %p132, %p133
      %p135 = scmp.ne.s32.totalorder %s123, %s124
      %p136 = scmp.eq.s32.totalorder %s37, 1
      %p137 = por %p135, %p136
      %p139 = scmp.ne.s32.totalorder %s124, %s138
      %p140 = scmp.eq.s32.totalorder %s37, 0
      %p141 = por %p139, %p140
      %s143 = sadd.s32 %s142, 1
      %p146 = scmp.eq.s32.totalorder %s31, 1
      %p147 = scmp.ne.s32.totalorder %s142, %s144
      %p148 = scmp.eq.s32.totalorder %s31, 0
      %p149 = por %p147, %p148
      %p150 = scmp.ne.s32.totalorder %s142, %s144
      %p151 = scmp.eq.s32.totalorder %s36, 1
      %p152 = por %p150, %p151
      %p153 = scmp.ne.s32.totalorder %s144, %s145
      %p154 = scmp.eq.s32.totalorder %s36, 0
      %p155 = por %p153, %p154
      %p156 = scmp.ne.s32.totalorder %s144, %s145
      %p157 = scmp.eq.s32.totalorder %s37, 1
      %p158 = por %p156, %p157
      %p160 = scmp.ne.s32.totalorder %s145, %s159
      %p161 = scmp.eq.s32.totalorder %s37, 0
      %p162 = por %p160, %p161
      %s164 = sadd.s32 %s163, 1
      %p167 = scmp.eq.s32.totalorder %s31, 1
      %p168 = scmp.ne.s32.totalorder %s163, %s165
      %p169 = scmp.eq.s32.totalorder %s31, 0
      %p170 = por %p168, %p169
      %p171 = scmp.ne.s32.totalorder %s163, %s165
      %p172 = scmp.eq.s32.totalorder %s36, 1
      %p173 = por %p171, %p172
      %p174 = scmp.ne.s32.totalorder %s165, %s166
      %p175 = scmp.eq.s32.totalorder %s36, 0
      %p176 = por %p174, %p175
      %p177 = scmp.ne.s32.totalorder %s165, %s166
      %p178 = scmp.eq.s32.totalorder %s37, 1
      %p179 = por %p177, %p178
      %p181 = scmp.ne.s32.totalorder %s166, %s180
      %p182 = scmp.eq.s32.totalorder %s37, 0
      %p183 = por %p181, %p182
      %s185 = sadd.s32 %s184, 1
      %p188 = scmp.eq.s32.totalorder %s31, 1
      %p189 = scmp.ne.s32.totalorder %s184, %s186
      %p190 = scmp.eq.s32.totalorder %s31, 0
      %p191 = por %p189, %p190
      %p192 = scmp.ne.s32.totalorder %s184, %s186
      %p193 = scmp.eq.s32.totalorder %s36, 1
      %p194 = por %p192, %p193
      %p195 = scmp.ne.s32.totalorder %s186, %s187
      %p196 = scmp.eq.s32.totalorder %s36, 0
      %p197 = por %p195, %p196
      %p198 = scmp.ne.s32.totalorder %s186, %s187
      %p199 = scmp.eq.s32.totalorder %s37, 1
      %p200 = por %p198, %p199
      %p202 = scmp.ne.s32.totalorder %s187, %s201
      %p203 = scmp.eq.s32.totalorder %s37, 0
      %p204 = por %p202, %p203
      %s206 = sadd.s32 %s205, 1
      %p209 = scmp.eq.s32.totalorder %s31, 1
      %p210 = scmp.ne.s32.totalorder %s205, %s207
      %p211 = scmp.eq.s32.totalorder %s31, 0
      %p212 = por %p210, %p211
      %p213 = scmp.ne.s32.totalorder %s205, %s207
      %p214 = scmp.eq.s32.totalorder %s36, 1
      %p215 = por %p213, %p214
      %p216 = scmp.ne.s32.totalorder %s207, %s208
      %p217 = scmp.eq.s32.totalorder %s36, 0
      %p218 = por %p216, %p217
      %p219 = scmp.ne.s32.totalorder %s207, %s208
      %p220 = scmp.eq.s32.totalorder %s37, 1
      %p221 = por %p219, %p220
      %p223 = scmp.ne.s32.totalorder %s208, %s222
      %p224 = scmp.eq.s32.totalorder %s37, 0
      %p225 = por %p223, %p224
      %s227 = sadd.s32 %s226, 1
      %p230 = scmp.eq.s32.totalorder %s31, 1
      %p231 = scmp.ne.s32.totalorder %s226, %s228
      %p232 = scmp.eq.s32.totalorder %s31, 0
      %p233 = por %p231, %p232
      %p234 = scmp.ne.s32.totalorder %s226, %s228
      %p235 = scmp.eq.s32.totalorder %s36, 1
      %p236 = por %p234, %p235
      %p237 = scmp.ne.s32.totalorder %s228, %s229
      %p238 = scmp.eq.s32.totalorder %s36, 0
      %p239 = por %p237, %p238
      %p240 = scmp.ne.s32.totalorder %s228, %s229
      %p241 = scmp.eq.s32.totalorder %s37, 1
      %p242 = por %p240, %p241
      %p244 = scmp.ne.s32.totalorder %s229, %s243
      %p245 = scmp.eq.s32.totalorder %s37, 0
      %p246 = por %p244, %p245
      %s247 = ssub.s32 %s38, %s50
      %s248 = ssub.s32 %s39, %s46
      %s249 = sor.u32 %s247, %s248
      %p250 = scmp.eq.s32.totalorder %s249, 0
      %s252 = sadd.s32 %s251, 1
      %s253 = scalar_select %p250, %s251, %s252
      %p256 = pneg %p250
      %p257 = scmp.eq.s32.totalorder %s31, 1
      %p258 = por %p256, %p257
      %p259 = scmp.ne.s32.totalorder %s251, %s254
      %p260 = scmp.eq.s32.totalorder %s31, 0
      %p261 = por %p259, %p260
      %p262 = scmp.ne.s32.totalorder %s251, %s254
      %p263 = scmp.eq.s32.totalorder %s36, 1
      %p264 = por %p262, %p263
      %p265 = scmp.ne.s32.totalorder %s254, %s255
      %p266 = scmp.eq.s32.totalorder %s36, 0
      %p267 = por %p265, %p266
      %p268 = scmp.ne.s32.totalorder %s254, %s255
      %p269 = scmp.eq.s32.totalorder %s37, 1
      %p270 = por %p268, %p269
      %p272 = scmp.ne.s32.totalorder %s255, %s271
      %p273 = scmp.eq.s32.totalorder %s37, 0
      %p274 = por %p272, %p273
      %s275 = ssub.s32 %s38, %s50
      %s276 = ssub.s32 %s39, %s46
      %s277 = sor.u32 %s275, %s276
      %p278 = scmp.eq.s32.totalorder %s277, 0
      %s280 = sadd.s32 %s279, 1
      %s281 = scalar_select %p278, %s279, %s280
      %p284 = pneg %p278
      %p285 = scmp.eq.s32.totalorder %s31, 1
      %p286 = por %p284, %p285
      %p287 = scmp.ne.s32.totalorder %s279, %s282
      %p288 = scmp.eq.s32.totalorder %s31, 0
      %p289 = por %p287, %p288
      %p290 = scmp.ne.s32.totalorder %s279, %s282
      %p291 = scmp.eq.s32.totalorder %s36, 1
      %p292 = por %p290, %p291
      %p293 = scmp.ne.s32.totalorder %s282, %s283
      %p294 = scmp.eq.s32.totalorder %s36, 0
      %p295 = por %p293, %p294
      %p296 = scmp.ne.s32.totalorder %s282, %s283
      %p297 = scmp.eq.s32.totalorder %s37, 1
      %p298 = por %p296, %p297
      %p300 = scmp.ne.s32.totalorder %s283, %s299
      %p301 = scmp.eq.s32.totalorder %s37, 0
      %p302 = por %p300, %p301
      %s303 = ssub.s32 %s38, %s50
      %s304 = ssub.s32 %s39, %s46
      %s305 = sor.u32 %s303, %s304
      %p306 = scmp.eq.s32.totalorder %s305, 0
      %s308 = sadd.s32 %s307, 1
      %s309 = scalar_select %p306, %s307, %s308
      %p312 = pneg %p306
      %p313 = scmp.eq.s32.totalorder %s31, 1
      %p314 = por %p312, %p313
      %p315 = scmp.ne.s32.totalorder %s307, %s310
      %p316 = scmp.eq.s32.totalorder %s31, 0
      %p317 = por %p315, %p316
      %p318 = scmp.ne.s32.totalorder %s307, %s310
      %p319 = scmp.eq.s32.totalorder %s36, 1
      %p320 = por %p318, %p319
      %p321 = scmp.ne.s32.totalorder %s310, %s311
      %p322 = scmp.eq.s32.totalorder %s36, 0
      %p323 = por %p321, %p322
      %p324 = scmp.ne.s32.totalorder %s310, %s311
      %p325 = scmp.eq.s32.totalorder %s37, 1
      %p326 = por %p324, %p325
      %p328 = scmp.ne.s32.totalorder %s311, %s327
      %p329 = scmp.eq.s32.totalorder %s37, 0
      %p330 = por %p328, %p329
      %p331 = scmp.le.s32.totalorder 1, %s31
      %p332 = scmp.lt.s32.totalorder %s31, 3
      %p333 = pnand %p331, %p332
      %p334 = pneg %p333
      // Predicated region
      $region9: #{tpu_custom_call.1} parent=5 // pred_check
        _
      $region10: #{tpu_custom_call.1} parent=5 // pred_check_branch
        %336 = sbr.rel (%p333) target = $region12
      $region11: #{tpu_custom_call.1} parent=5 // pred_region
        %s337 = ssub.s32 %s31, 1
        // Predicated region
        $region13: #{tpu_custom_call.1} parent=11 // pred_check
          %p338 = pneg %p92
        $region14: #{tpu_custom_call.1} parent=11 // pred_check_branch
          %340 = sbr.rel (%p338) target = $region16
        $region15: #{tpu_custom_call.1} parent=11 // pred_region
          %s342 = ssub.s32 16, 16
          %343 = vsyncadd [#allocation6], %s342
          %s345 = sshll.u32 [#allocation5], 4
          %s346 = int_to_ptr.vmem [resolvable:$true] %s345
          %348 = dma.hbm_to_vmem [thread:$0]  %s1, 16, %s346, [#allocation6]
        $region16: #{tpu_custom_call.1} parent=11 // pred_fallthru
          _
        // Predicated region
        $region17: #{tpu_custom_call.1} parent=11 // pred_check
          %p349 = pneg %p113
        $region18: #{tpu_custom_call.1} parent=11 // pred_check_branch
          %351 = sbr.rel (%p349) target = $region20
        $region19: #{tpu_custom_call.1} parent=11 // pred_region
          %s353 = ssub.s32 16, 16
          %354 = vsyncadd [#allocation6], %s353
          %s356 = sshll.u32 [#allocation7], 4
          %s357 = int_to_ptr.vmem [resolvable:$true] %s356
          %359 = dma.hbm_to_vmem [thread:$0]  %s2, 16, %s357, [#allocation6]
        $region20: #{tpu_custom_call.1} parent=11 // pred_fallthru
          _
        // Predicated region
        $region21: #{tpu_custom_call.1} parent=11 // pred_check
          %p360 = pneg %p134
        $region22: #{tpu_custom_call.1} parent=11 // pred_check_branch
          %362 = sbr.rel (%p360) target = $region24
        $region23: #{tpu_custom_call.1} parent=11 // pred_region
          %s364 = ssub.s32 512, 512
          %365 = vsyncadd [#allocation9], %s364
          %s366 = sshll.u32 [#allocation8], 4
          %s367 = int_to_ptr.vmem [resolvable:$true] %s366
          %372 = dma.hbm_to_vmem [thread:$0]  %s3, 512, %s367, [#allocation9], 128, 128, 8
        $region24: #{tpu_custom_call.1} parent=11 // pred_fallthru
          _
        // Predicated region
        $region25: #{tpu_custom_call.1} parent=11 // pred_check
          %p373 = pneg %p155
        $region26: #{tpu_custom_call.1} parent=11 // pred_check_branch
          %375 = sbr.rel (%p373) target = $region28
        $region27: #{tpu_custom_call.1} parent=11 // pred_region
          %s377 = ssub.s32 512, 512
          %378 = vsyncadd [#allocation9], %s377
          %s379 = sshll.u32 [#allocation10], 4
          %s380 = int_to_ptr.vmem [resolvable:$true] %s379
          %385 = dma.hbm_to_vmem [thread:$0]  %s4, 512, %s380, [#allocation9], 128, 128, 8
        $region28: #{tpu_custom_call.1} parent=11 // pred_fallthru
          _
        // Predicated region
        $region29: #{tpu_custom_call.1} parent=11 // pred_check
          %p386 = pneg %p176
        $region30: #{tpu_custom_call.1} parent=11 // pred_check_branch
          %388 = sbr.rel (%p386) target = $region32
        $region31: #{tpu_custom_call.1} parent=11 // pred_region
          %s390 = ssub.s32 512, 512
          %391 = vsyncadd [#allocation12], %s390
          %s392 = sshll.u32 [#allocation11], 4
          %s393 = int_to_ptr.vmem [resolvable:$true] %s392
          %398 = dma.hbm_to_vmem [thread:$0]  %s5, 512, %s393, [#allocation12], 128, 128, 8
        $region32: #{tpu_custom_call.1} parent=11 // pred_fallthru
          _
        // Predicated region
        $region33: #{tpu_custom_call.1} parent=11 // pred_check
          %p399 = pneg %p197
        $region34: #{tpu_custom_call.1} parent=11 // pred_check_branch
          %401 = sbr.rel (%p399) target = $region36
        $region35: #{tpu_custom_call.1} parent=11 // pred_region
          %s403 = ssub.s32 16, 16
          %404 = vsyncadd [#allocation12], %s403
          %s406 = sshll.u32 [#allocation13], 4
          %s407 = int_to_ptr.vmem [resolvable:$true] %s406
          %409 = dma.hbm_to_vmem [thread:$0]  %s6, 16, %s407, [#allocation12]
        $region36: #{tpu_custom_call.1} parent=11 // pred_fallthru
          _
        // Predicated region
        $region37: #{tpu_custom_call.1} parent=11 // pred_check
          %p410 = pneg %p218
        $region38: #{tpu_custom_call.1} parent=11 // pred_check_branch
          %412 = sbr.rel (%p410) target = $region40
        $region39: #{tpu_custom_call.1} parent=11 // pred_region
          %s414 = ssub.s32 16, 16
          %415 = vsyncadd [#allocation15], %s414
          %s417 = sshll.u32 [#allocation14], 4
          %s418 = int_to_ptr.vmem [resolvable:$true] %s417
          %420 = dma.hbm_to_vmem [thread:$0]  %s7, 16, %s418, [#allocation15]
        $region40: #{tpu_custom_call.1} parent=11 // pred_fallthru
          _
        // Predicated region
        $region41: #{tpu_custom_call.1} parent=11 // pred_check
          %p421 = pneg %p239
        $region42: #{tpu_custom_call.1} parent=11 // pred_check_branch
          %423 = sbr.rel (%p421) target = $region44
        $region43: #{tpu_custom_call.1} parent=11 // pred_region
          %s425 = ssub.s32 16, 16
          %426 = vsyncadd [#allocation15], %s425
          %s428 = sshll.u32 [#allocation16], 4
          %s429 = int_to_ptr.vmem [resolvable:$true] %s428
          %431 = dma.hbm_to_vmem [thread:$0]  %s8, 16, %s429, [#allocation15]
        $region44: #{tpu_custom_call.1} parent=11 // pred_fallthru
          _
      $region12: #{tpu_custom_call.1} parent=5 // pred_fallthru
        _
      %p432 = scmp.lt.s32.totalorder %s31, 2
      // Predicated region
      $region45: #{tpu_custom_call.1} parent=5 // pred_check
        %p433 = pneg %p432
      $region46: #{tpu_custom_call.1} parent=5 // pred_check_branch
        %435 = sbr.rel (%p433) target = $region48
      $region47: #{tpu_custom_call.1} parent=5 // pred_region
        // Predicated region
        $region49: #{tpu_custom_call.1} parent=47 // pred_check
          %p436 = pneg %p65
        $region50: #{tpu_custom_call.1} parent=47 // pred_check_branch
          %438 = sbr.rel (%p436) target = $region52
        $region51: #{tpu_custom_call.1} parent=47 // pred_region
          %s439 = sand.u32 %s55, 1
          %s440 = scalar_lea.sflag [#allocation3], %s439
          %s441 = sand.u32 %s55, 1
          %s442 = smul.addr %s441, 8
          %s443 = scalar_lea.vmem [#allocation2], %s442
          %s445 = ssub.s32 128, 128
          %446 = vsyncadd %s440, %s445
          %s447 = sadd.s32 %s39, %s38
          %s448 = smul.addr %s447, 128
          %s449 = scalar_lea.hbm %s0, %s448
          %s451 = sshll.u32 %s443, 4
          %s452 = int_to_ptr.vmem [resolvable:$true] %s451
          %454 = dma.hbm_to_vmem [thread:$0]  %s449, 128, %s452, %s440
        $region52: #{tpu_custom_call.1} parent=47 // pred_fallthru
          _
      $region48: #{tpu_custom_call.1} parent=5 // pred_fallthru
        _
      %p455 = scmp.le.s32.totalorder 1, %s31
      %p456 = scmp.lt.s32.totalorder %s31, 3
      %p457 = pnand %p455, %p456
      %p458 = pneg %p457
      // Predicated region
      $region53: #{tpu_custom_call.1} parent=5 // pred_check
        _
      $region54: #{tpu_custom_call.1} parent=5 // pred_check_branch
        %460 = sbr.rel (%p457) target = $region56
      $region55: #{tpu_custom_call.1} parent=5 // pred_region
        %s461 = ssub.s32 %s31, 1
        %s462 = sand.u32 %s58, 1
        %s463 = scalar_lea.sflag [#allocation3], %s462
        %s464 = sand.u32 %s58, 1
        %s465 = smul.addr %s464, 8
        %s466 = scalar_lea.vmem [#allocation2], %s465
        // Predicated region
        $region57: #{tpu_custom_call.1} parent=55 // pred_check
          %p467 = pneg %p71
        $region58: #{tpu_custom_call.1} parent=55 // pred_check_branch
          %469 = sbr.rel (%p467) target = $region60
        $region59: #{tpu_custom_call.1} parent=55 // pred_region
          %470 = dma.done %s463, 128
        $region60: #{tpu_custom_call.1} parent=55 // pred_fallthru
          _
        // Predicated region
        $region61: #{tpu_custom_call.1} parent=55 // pred_check
          %p471 = pneg %p92
        $region62: #{tpu_custom_call.1} parent=55 // pred_check_branch
          %473 = sbr.rel (%p471) target = $region64
        $region63: #{tpu_custom_call.1} parent=55 // pred_region
          %474 = dma.done [#allocation6], 16
        $region64: #{tpu_custom_call.1} parent=55 // pred_fallthru
          _
        // Predicated region
        $region65: #{tpu_custom_call.1} parent=55 // pred_check
          %p475 = pneg %p113
        $region66: #{tpu_custom_call.1} parent=55 // pred_check_branch
          %477 = sbr.rel (%p475) target = $region68
        $region67: #{tpu_custom_call.1} parent=55 // pred_region
          %478 = dma.done [#allocation6], 16
        $region68: #{tpu_custom_call.1} parent=55 // pred_fallthru
          _
        // Predicated region
        $region69: #{tpu_custom_call.1} parent=55 // pred_check
          %p479 = pneg %p134
        $region70: #{tpu_custom_call.1} parent=55 // pred_check_branch
          %481 = sbr.rel (%p479) target = $region72
        $region71: #{tpu_custom_call.1} parent=55 // pred_region
          %482 = dma.done [#allocation9], 512
        $region72: #{tpu_custom_call.1} parent=55 // pred_fallthru
          _
        // Predicated region
        $region73: #{tpu_custom_call.1} parent=55 // pred_check
          %p483 = pneg %p155
        $region74: #{tpu_custom_call.1} parent=55 // pred_check_branch
          %485 = sbr.rel (%p483) target = $region76
        $region75: #{tpu_custom_call.1} parent=55 // pred_region
          %486 = dma.done [#allocation9], 512
        $region76: #{tpu_custom_call.1} parent=55 // pred_fallthru
          _
        // Predicated region
        $region77: #{tpu_custom_call.1} parent=55 // pred_check
          %p487 = pneg %p176
        $region78: #{tpu_custom_call.1} parent=55 // pred_check_branch
          %489 = sbr.rel (%p487) target = $region80
        $region79: #{tpu_custom_call.1} parent=55 // pred_region
          %490 = dma.done [#allocation12], 512
        $region80: #{tpu_custom_call.1} parent=55 // pred_fallthru
          _
        // Predicated region
        $region81: #{tpu_custom_call.1} parent=55 // pred_check
          %p491 = pneg %p197
        $region82: #{tpu_custom_call.1} parent=55 // pred_check_branch
          %493 = sbr.rel (%p491) target = $region84
        $region83: #{tpu_custom_call.1} parent=55 // pred_region
          %494 = dma.done [#allocation12], 16
        $region84: #{tpu_custom_call.1} parent=55 // pred_fallthru
          _
        // Predicated region
        $region85: #{tpu_custom_call.1} parent=55 // pred_check
          %p495 = pneg %p218
        $region86: #{tpu_custom_call.1} parent=55 // pred_check_branch
          %497 = sbr.rel (%p495) target = $region88
        $region87: #{tpu_custom_call.1} parent=55 // pred_region
          %498 = dma.done [#allocation15], 16
        $region88: #{tpu_custom_call.1} parent=55 // pred_fallthru
          _
        // Predicated region
        $region89: #{tpu_custom_call.1} parent=55 // pred_check
          %p499 = pneg %p239
        $region90: #{tpu_custom_call.1} parent=55 // pred_check_branch
          %501 = sbr.rel (%p499) target = $region92
        $region91: #{tpu_custom_call.1} parent=55 // pred_region
          %502 = dma.done [#allocation15], 16
        $region92: #{tpu_custom_call.1} parent=55 // pred_fallthru
          _
        %s503 = sand.u32 %s58, 1
        %s504 = scalar_lea.sflag [#allocation3], %s503
        %s505 = sand.u32 %s58, 1
        %s506 = smul.addr %s505, 8
        %s507 = scalar_lea.vmem [#allocation2], %s506
        %p508 = pneg %p71
        %p509 = pneg %p68
        %p510 = pneg %p92
        %p511 = pneg %p89
        %p512 = pneg %p113
        %p513 = pneg %p110
        %p514 = pneg %p134
        %p515 = pneg %p131
        %p516 = pneg %p155
        %p517 = pneg %p152
        %p518 = pneg %p176
        %p519 = pneg %p173
        %p520 = pneg %p197
        %p521 = pneg %p194
        %p522 = pneg %p218
        %p523 = pneg %p215
        %p524 = pneg %p239
        %p525 = pneg %p236
        %p526 = pneg %p267
        %p527 = pneg %p264
        %s528 = sand.u32 %s254, 1
        %s529 = scalar_lea.sflag [#allocation4], %s528
        %s530 = sand.u32 %s254, 1
        %s531 = smul.addr %s530, 32
        %s532 = scalar_lea.vmem [#allocation17], %s531
        %p533 = pneg %p295
        %p534 = pneg %p292
        %s535 = sand.u32 %s36, 1
        %s536 = scalar_lea.sflag [#allocation19], %s535
        %s537 = sand.u32 %s282, 1
        %s538 = smul.addr %s537, 32
        %s539 = scalar_lea.vmem [#allocation18], %s538
        %p540 = pneg %p323
        %p541 = pneg %p320
        %s542 = sand.u32 %s36, 1
        %s543 = scalar_lea.sflag [#allocation19], %s542
        %s544 = sand.u32 %s310, 1
        %s545 = smul.addr %s544, 32
        %s546 = scalar_lea.vmem [#allocation20], %s545
        %v547 = vld [vmem:[%s466] sm:$0xff]
        %v548 = vld [vmem:[#allocation5] sm:$0x1]
        %v549 = vld [vmem:[#allocation7] sm:$0x1]
        %vm550 = vcmask 261120
        %v551 = vsel %vm550, %v547, 0.0
        %552 = vadd.xlane.f32.xlu0 %v551
        %v553 = vpop.xlane.xlu0 %552
        %v554 = vrcp.pop 32.0
        %v555 = vmul.f32 %v553, %v554
        %v556 = vsub.f32 %v547, %v555
        %v557 = vmul.f32 %v556, %v556
        %v558 = vsel %vm550, %v557, 0.0
        %559 = vadd.xlane.f32.xlu0 %v558
        %v560 = vpop.xlane.xlu0 %559
        %v561 = vmul.f32 %v560, %v554
        %v562 = vadd.f32 %v561, 1e-05
        %v563 = vrsqrt.pop %v562
        %v564 = vmul.f32 %v556, %v563
        %v566 = vlaneseq
        %v567 = vshrl.u32 %v566, 7
        %v568 = vsub.s32 0, %v567
        %v569 = vrot.slane %v548, %v568
        %v571 = vmul.f32 %v564, %v569
        %v573 = vlaneseq
        %v574 = vshrl.u32 %v573, 7
        %v575 = vsub.s32 0, %v574
        %v576 = vrot.slane %v549, %v575
        %v578 = vadd.f32 %v571, %v576
        %v579 = vld [vmem:[#allocation8] sm:$0xff]
        %v580 = vld [vmem:[#allocation8 + $0x8] sm:$0xff]
        %v581 = vld [vmem:[#allocation8 + $0x10] sm:$0xff]
        %v582 = vld [vmem:[#allocation8 + $0x18] sm:$0xff]
        %v583 = vld [vmem:[#allocation13] sm:$0x1]
        %v585 = vlaneseq
        %v586 = vshrl.u32 %v585, 7
        %v587 = vsub.s32 0, %v586
        %v588 = vrot.slane %v583, %v587
        %v591 = vsel %vm550, %v578, 0
        %593 = vmatprep.subr.mxu0 0.0
        %594 = vmatpush1.msra.mxu0 %v579
        %595 = vmatprep.subr.mxu0 0.0
        %596 = vmatpush1.msra.mxu0 %v580
        %597 = vmatprep.subr.mxu0 0.0
        %598 = vmatpush1.msra.mxu0 %v581
        %599 = vmatprep.subr.mxu0 0.0
        %600 = vmatpush1.msra.mxu0 %v582
        %601 = vmatprep.subr.mxu0 0.0
        %602 = vmatpush1.msra.mxu0 0.0
        %603 = vmatprep.subr.mxu0 0.0
        %604 = vmatpush1.msra.mxu0 0.0
        %605 = vmatprep.subr.mxu0 0.0
        %606 = vmatpush1.msra.mxu0 0.0
        %607 = vmatprep.subr.mxu0 0.0
        %608 = vmatpush1.msra.mxu0 0.0
        %609 = vmatprep.subr.mxu0 0.0
        %610 = vmatpush1.msra.mxu0 0.0
        %611 = vmatprep.subr.mxu0 0.0
        %612 = vmatpush1.msra.mxu0 0.0
        %613 = vmatprep.subr.mxu0 0.0
        %614 = vmatpush1.msra.mxu0 0.0
        %615 = vmatprep.subr.mxu0 0.0
        %616 = vmatpush1.msra.mxu0 0.0
        %617 = vmatprep.subr.mxu0 0.0
        %618 = vmatpush1.msra.mxu0 0.0
        %619 = vmatprep.subr.mxu0 0.0
        %620 = vmatpush1.msra.mxu0 0.0
        %621 = vmatprep.subr.mxu0 0.0
        %622 = vmatpush1.msra.mxu0 0.0
        %623 = vmatprep.subr.mxu0 0.0
        %624 = vmatpush1.msra.mxu0 0.0
        %625 = vmatprep.subr.mxu0 0.0
        %626 = vmatpush1.msra.mxu0 0.0
        %627 = vmatprep.subr.mxu0 0.0
        %628 = vmatpush1.msra.mxu0 0.0
        %629 = vmatprep.subr.mxu0 0.0
        %630 = vmatpush1.msra.mxu0 0.0
        %631 = vmatprep.subr.mxu0 0.0
        %632 = vmatpush1.msra.mxu0 0.0
        %633 = vmatprep.subr.mxu0 0.0
        %634 = vmatpush1.msra.mxu0 0.0
        %635 = vmatprep.subr.mxu0 0.0
        %636 = vmatpush1.msra.mxu0 0.0
        %637 = vmatprep.subr.mxu0 0.0
        %638 = vmatpush1.msra.mxu0 0.0
        %639 = vmatprep.subr.mxu0 0.0
        %640 = vmatpush1.msra.mxu0 0.0
        %641 = vmatprep.subr.mxu0 0.0
        %642 = vmatpush1.msra.mxu0 0.0
        %643 = vmatprep.subr.mxu0 0.0
        %644 = vmatpush1.msra.mxu0 0.0
        %645 = vmatprep.subr.mxu0 0.0
        %646 = vmatpush1.msra.mxu0 0.0
        %647 = vmatprep.subr.mxu0 0.0
        %648 = vmatpush1.msra.mxu0 0.0
        %649 = vmatprep.subr.mxu0 0.0
        %650 = vmatpush1.msra.mxu0 0.0
        %651 = vmatprep.subr.mxu0 0.0
        %652 = vmatpush1.msra.mxu0 0.0
        %653 = vmatprep.subr.mxu0 0.0
        %654 = vmatpush1.msra.mxu0 0.0
        %655 = vmatprep.subr.mxu0 0.0
        %656 = vmatpush1.msra.mxu0 0.0
        %657 = vmatprep.mubr.f32.mxu0 0.0
        %658 = vmatmul.mubr.f32.gmra.mrb[0].mxu0 %v591
        %v659 = vpop.f32.mrb[0].mxu0
        %v660 = vadd.f32 %v588, %v659
        %v661 = vpop.f32.mrb[0].mxu0
        %662 = vdwg.mxu0
        %v663 = vld [vmem:[#allocation10] sm:$0xff]
        %v664 = vld [vmem:[#allocation10 + $0x8] sm:$0xff]
        %v665 = vld [vmem:[#allocation10 + $0x10] sm:$0xff]
        %v666 = vld [vmem:[#allocation10 + $0x18] sm:$0xff]
        %v667 = vld [vmem:[#allocation14] sm:$0x1]
        %v669 = vlaneseq
        %v670 = vshrl.u32 %v669, 7
        %v671 = vsub.s32 0, %v670
        %v672 = vrot.slane %v667, %v671
        %674 = vmatprep.subr.mxu0 0.0
        %675 = vmatpush1.msra.mxu0 %v663
        %676 = vmatprep.subr.mxu0 0.0
        %677 = vmatpush1.msra.mxu0 %v664
        %678 = vmatprep.subr.mxu0 0.0
        %679 = vmatpush1.msra.mxu0 %v665
        %680 = vmatprep.subr.mxu0 0.0
        %681 = vmatpush1.msra.mxu0 %v666
        %682 = vmatprep.subr.mxu0 0.0
        %683 = vmatpush1.msra.mxu0 0.0
        %684 = vmatprep.subr.mxu0 0.0
        %685 = vmatpush1.msra.mxu0 0.0
        %686 = vmatprep.subr.mxu0 0.0
        %687 = vmatpush1.msra.mxu0 0.0
        %688 = vmatprep.subr.mxu0 0.0
        %689 = vmatpush1.msra.mxu0 0.0
        %690 = vmatprep.subr.mxu0 0.0
        %691 = vmatpush1.msra.mxu0 0.0
        %692 = vmatprep.subr.mxu0 0.0
        %693 = vmatpush1.msra.mxu0 0.0
        %694 = vmatprep.subr.mxu0 0.0
        %695 = vmatpush1.msra.mxu0 0.0
        %696 = vmatprep.subr.mxu0 0.0
        %697 = vmatpush1.msra.mxu0 0.0
        %698 = vmatprep.subr.mxu0 0.0
        %699 = vmatpush1.msra.mxu0 0.0
        %700 = vmatprep.subr.mxu0 0.0
        %701 = vmatpush1.msra.mxu0 0.0
        %702 = vmatprep.subr.mxu0 0.0
        %703 = vmatpush1.msra.mxu0 0.0
        %704 = vmatprep.subr.mxu0 0.0
        %705 = vmatpush1.msra.mxu0 0.0
        %706 = vmatprep.subr.mxu0 0.0
        %707 = vmatpush1.msra.mxu0 0.0
        %708 = vmatprep.subr.mxu0 0.0
        %709 = vmatpush1.msra.mxu0 0.0
        %710 = vmatprep.subr.mxu0 0.0
        %711 = vmatpush1.msra.mxu0 0.0
        %712 = vmatprep.subr.mxu0 0.0
        %713 = vmatpush1.msra.mxu0 0.0
        %714 = vmatprep.subr.mxu0 0.0
        %715 = vmatpush1.msra.mxu0 0.0
        %716 = vmatprep.subr.mxu0 0.0
        %717 = vmatpush1.msra.mxu0 0.0
        %718 = vmatprep.subr.mxu0 0.0
        %719 = vmatpush1.msra.mxu0 0.0
        %720 = vmatprep.subr.mxu0 0.0
        %721 = vmatpush1.msra.mxu0 0.0
        %722 = vmatprep.subr.mxu0 0.0
        %723 = vmatpush1.msra.mxu0 0.0
        %724 = vmatprep.subr.mxu0 0.0
        %725 = vmatpush1.msra.mxu0 0.0
        %726 = vmatprep.subr.mxu0 0.0
        %727 = vmatpush1.msra.mxu0 0.0
        %728 = vmatprep.subr.mxu0 0.0
        %729 = vmatpush1.msra.mxu0 0.0
        %730 = vmatprep.subr.mxu0 0.0
        %731 = vmatpush1.msra.mxu0 0.0
        %732 = vmatprep.subr.mxu0 0.0
        %733 = vmatpush1.msra.mxu0 0.0
        %734 = vmatprep.subr.mxu0 0.0
        %735 = vmatpush1.msra.mxu0 0.0
        %736 = vmatprep.subr.mxu0 0.0
        %737 = vmatpush1.msra.mxu0 0.0
        %738 = vmatprep.mubr.f32.mxu0 0.0
        %739 = vmatmul.mubr.f32.gmra.mrb[0].mxu0 %v591
        %v740 = vpop.f32.mrb[0].mxu0
        %v741 = vadd.f32 %v672, %v740
        %v742 = vpop.f32.mrb[0].mxu0
        %743 = vdwg.mxu0
        %v744 = vld [vmem:[#allocation11] sm:$0xff]
        %v745 = vld [vmem:[#allocation11 + $0x8] sm:$0xff]
        %v746 = vld [vmem:[#allocation11 + $0x10] sm:$0xff]
        %v747 = vld [vmem:[#allocation11 + $0x18] sm:$0xff]
        %v748 = vld [vmem:[#allocation16] sm:$0x1]
        %v750 = vlaneseq
        %v751 = vshrl.u32 %v750, 7
        %v752 = vsub.s32 0, %v751
        %v753 = vrot.slane %v748, %v752
        %755 = vmatprep.subr.mxu0 0.0
        %756 = vmatpush1.msra.mxu0 %v744
        %757 = vmatprep.subr.mxu0 0.0
        %758 = vmatpush1.msra.mxu0 %v745
        %759 = vmatprep.subr.mxu0 0.0
        %760 = vmatpush1.msra.mxu0 %v746
        %761 = vmatprep.subr.mxu0 0.0
        %762 = vmatpush1.msra.mxu0 %v747
        %763 = vmatprep.subr.mxu0 0.0
        %764 = vmatpush1.msra.mxu0 0.0
        %765 = vmatprep.subr.mxu0 0.0
        %766 = vmatpush1.msra.mxu0 0.0
        %767 = vmatprep.subr.mxu0 0.0
        %768 = vmatpush1.msra.mxu0 0.0
        %769 = vmatprep.subr.mxu0 0.0
        %770 = vmatpush1.msra.mxu0 0.0
        %771 = vmatprep.subr.mxu0 0.0
        %772 = vmatpush1.msra.mxu0 0.0
        %773 = vmatprep.subr.mxu0 0.0
        %774 = vmatpush1.msra.mxu0 0.0
        %775 = vmatprep.subr.mxu0 0.0
        %776 = vmatpush1.msra.mxu0 0.0
        %777 = vmatprep.subr.mxu0 0.0
        %778 = vmatpush1.msra.mxu0 0.0
        %779 = vmatprep.subr.mxu0 0.0
        %780 = vmatpush1.msra.mxu0 0.0
        %781 = vmatprep.subr.mxu0 0.0
        %782 = vmatpush1.msra.mxu0 0.0
        %783 = vmatprep.subr.mxu0 0.0
        %784 = vmatpush1.msra.mxu0 0.0
        %785 = vmatprep.subr.mxu0 0.0
        %786 = vmatpush1.msra.mxu0 0.0
        %787 = vmatprep.subr.mxu0 0.0
        %788 = vmatpush1.msra.mxu0 0.0
        %789 = vmatprep.subr.mxu0 0.0
        %790 = vmatpush1.msra.mxu0 0.0
        %791 = vmatprep.subr.mxu0 0.0
        %792 = vmatpush1.msra.mxu0 0.0
        %793 = vmatprep.subr.mxu0 0.0
        %794 = vmatpush1.msra.mxu0 0.0
        %795 = vmatprep.subr.mxu0 0.0
        %796 = vmatpush1.msra.mxu0 0.0
        %797 = vmatprep.subr.mxu0 0.0
        %798 = vmatpush1.msra.mxu0 0.0
        %799 = vmatprep.subr.mxu0 0.0
        %800 = vmatpush1.msra.mxu0 0.0
        %801 = vmatprep.subr.mxu0 0.0
        %802 = vmatpush1.msra.mxu0 0.0
        %803 = vmatprep.subr.mxu0 0.0
        %804 = vmatpush1.msra.mxu0 0.0
        %805 = vmatprep.subr.mxu0 0.0
        %806 = vmatpush1.msra.mxu0 0.0
        %807 = vmatprep.subr.mxu0 0.0
        %808 = vmatpush1.msra.mxu0 0.0
        %809 = vmatprep.subr.mxu0 0.0
        %810 = vmatpush1.msra.mxu0 0.0
        %811 = vmatprep.subr.mxu0 0.0
        %812 = vmatpush1.msra.mxu0 0.0
        %813 = vmatprep.subr.mxu0 0.0
        %814 = vmatpush1.msra.mxu0 0.0
        %815 = vmatprep.subr.mxu0 0.0
        %816 = vmatpush1.msra.mxu0 0.0
        %817 = vmatprep.subr.mxu0 0.0
        %818 = vmatpush1.msra.mxu0 0.0
        %819 = vmatprep.mubr.f32.mxu0 0.0
        %820 = vmatmul.mubr.f32.gmra.mrb[0].mxu0 %v591
        %v821 = vpop.f32.mrb[0].mxu0
        %v822 = vadd.f32 %v753, %v821
        %v823 = vpop.f32.mrb[0].mxu0
        %824 = vdwg.mxu0
        %v825 = vmul.f32 %v660, 0.5100697
        %827 = vrot.lane.b32.xlu0 %v825, 120
        %v828 = vpop.permute.xlu0 %827
        %830 = vrot.lane.b32.xlu0 %v825, 112
        %v831 = vpop.permute.xlu0 %830
        %833 = vrot.lane.b32.xlu0 %v825, 104
        %v834 = vpop.permute.xlu0 %833
        %v836 = vcombine.low %v825, %v831
        %v837 = vcombine.high %v825, %v831
        %v839 = vunpack.c.l.s4 1983009808
        %v840 = vunpack.c.0.s8 %v839
        %v841 = vlaneseq
        %v842 = vshrl.u32 %v841, 7
        %v843 = vsub.s32 %v840, %v842
        %v844 = vrot.slane %v836, %v843
        %v846 = vunpack.c.l.s4 1983009808
        %v847 = vunpack.c.0.s8 %v846
        %v848 = vlaneseq
        %v849 = vshrl.u32 %v848, 7
        %v850 = vsub.s32 %v847, %v849
        %v851 = vrot.slane %v837, %v850
        %v852 = vcombine.low %v828, %v834
        %v853 = vcombine.high %v828, %v834
        %v855 = vunpack.c.l.s4 1983009808
        %v856 = vunpack.c.0.s8 %v855
        %v857 = vlaneseq
        %v858 = vshrl.u32 %v857, 7
        %v859 = vsub.s32 %v856, %v858
        %v860 = vrot.slane %v852, %v859
        %v862 = vunpack.c.l.s4 1983009808
        %v863 = vunpack.c.0.s8 %v862
        %v864 = vlaneseq
        %v865 = vshrl.u32 %v864, 7
        %v866 = vsub.s32 %v863, %v865
        %v867 = vrot.slane %v853, %v866
        %v868 = vcombine.low %v844, %v860
        %v869 = vcombine.high %v844, %v860
        %v871 = vunpack.c.l.s4 1934713408
        %v872 = vunpack.c.0.s8 %v871
        %v873 = vlaneseq
        %v874 = vshrl.u32 %v873, 7
        %v875 = vsub.s32 %v872, %v874
        %v876 = vrot.slane %v868, %v875
        %v878 = vunpack.c.l.s4 1934713408
        %v879 = vunpack.c.0.s8 %v878
        %v880 = vlaneseq
        %v881 = vshrl.u32 %v880, 7
        %v882 = vsub.s32 %v879, %v881
        %v883 = vrot.slane %v869, %v882
        %v884 = vcombine.low %v851, %v867
        %v885 = vcombine.high %v851, %v867
        %v887 = vunpack.c.l.s4 1934713408
        %v888 = vunpack.c.0.s8 %v887
        %v889 = vlaneseq
        %v890 = vshrl.u32 %v889, 7
        %v891 = vsub.s32 %v888, %v890
        %v892 = vrot.slane %v884, %v891
        %v894 = vunpack.c.l.s4 1934713408
        %v895 = vunpack.c.0.s8 %v894
        %v896 = vlaneseq
        %v897 = vshrl.u32 %v896, 7
        %v898 = vsub.s32 %v895, %v897
        %v899 = vrot.slane %v885, %v898
        %v900 = vcombine.high %v876, 0.0
        %v901 = vcombine.high %v883, 0.0
        %v902 = vcombine.high %v892, 0.0
        %v903 = vcombine.high %v899, 0.0
        %v904 = vcombine.low %v876, %v883
        %v906 = vunpack.c.l.s4 1983009808
        %v907 = vunpack.c.0.s8 %v906
        %v908 = vlaneseq
        %v909 = vshrl.u32 %v908, 7
        %v910 = vsub.s32 %v907, %v909
        %v911 = vrot.slane %v904, %v910
        %v912 = vcombine.low %v900, %v901
        %v914 = vunpack.c.l.s4 1983009808
        %v915 = vunpack.c.0.s8 %v914
        %v916 = vlaneseq
        %v917 = vshrl.u32 %v916, 7
        %v918 = vsub.s32 %v915, %v917
        %v919 = vrot.slane %v912, %v918
        %v920 = vcombine.low %v892, %v899
        %v922 = vunpack.c.l.s4 1983009808
        %v923 = vunpack.c.0.s8 %v922
        %v924 = vlaneseq
        %v925 = vshrl.u32 %v924, 7
        %v926 = vsub.s32 %v923, %v925
        %v927 = vrot.slane %v920, %v926
        %v928 = vcombine.low %v902, %v903
        %v930 = vunpack.c.l.s4 1983009808
        %v931 = vunpack.c.0.s8 %v930
        %v932 = vlaneseq
        %v933 = vshrl.u32 %v932, 7
        %v934 = vsub.s32 %v931, %v933
        %v935 = vrot.slane %v928, %v934
        %v936 = vcombine.low %v911, %v919
        %v937 = vcombine.high %v911, %v919
        %v939 = vunpack.c.l.s4 1934713408
        %v940 = vunpack.c.0.s8 %v939
        %v941 = vlaneseq
        %v942 = vshrl.u32 %v941, 7
        %v943 = vsub.s32 %v940, %v942
        %v944 = vrot.slane %v936, %v943
        %v946 = vunpack.c.l.s4 1934713408
        %v947 = vunpack.c.0.s8 %v946
        %v948 = vlaneseq
        %v949 = vshrl.u32 %v948, 7
        %v950 = vsub.s32 %v947, %v949
        %v951 = vrot.slane %v937, %v950
        %v952 = vcombine.low %v927, %v935
        %v953 = vcombine.high %v927, %v935
        %v955 = vunpack.c.l.s4 1934713408
        %v956 = vunpack.c.0.s8 %v955
        %v957 = vlaneseq
        %v958 = vshrl.u32 %v957, 7
        %v959 = vsub.s32 %v956, %v958
        %v960 = vrot.slane %v952, %v959
        %v962 = vunpack.c.l.s4 1934713408
        %v963 = vunpack.c.0.s8 %v962
        %v964 = vlaneseq
        %v965 = vshrl.u32 %v964, 7
        %v966 = vsub.s32 %v963, %v965
        %v967 = vrot.slane %v953, %v966
        %v968 = vcombine.low %v944, %v960
        %v969 = vcombine.high %v944, %v960
        %v970 = vcombine.low %v951, %v967
        %v971 = vcombine.high %v951, %v967
        %vm972 = vcmask 64512
        %973 = vst.msk [vmem:[%s532] sm:$0xff] %vm972, %v968
        %974 = vst.msk [vmem:[%s532 + $0x8] sm:$0xff] %vm972, %v969
        %975 = vst.msk [vmem:[%s532 + $0x10] sm:$0xff] %vm972, %v970
        %976 = vst.msk [vmem:[%s532 + $0x18] sm:$0xff] %vm972, %v971
        %978 = vrot.lane.b32.xlu0 %v741, 120
        %v979 = vpop.permute.xlu0 %978
        %981 = vrot.lane.b32.xlu0 %v741, 112
        %v982 = vpop.permute.xlu0 %981
        %984 = vrot.lane.b32.xlu0 %v741, 104
        %v985 = vpop.permute.xlu0 %984
        %v987 = vcombine.low %v741, %v982
        %v988 = vcombine.high %v741, %v982
        %v990 = vunpack.c.l.s4 1983009808
        %v991 = vunpack.c.0.s8 %v990
        %v992 = vlaneseq
        %v993 = vshrl.u32 %v992, 7
        %v994 = vsub.s32 %v991, %v993
        %v995 = vrot.slane %v987, %v994
        %v997 = vunpack.c.l.s4 1983009808
        %v998 = vunpack.c.0.s8 %v997
        %v999 = vlaneseq
        %v1000 = vshrl.u32 %v999, 7
        %v1001 = vsub.s32 %v998, %v1000
        %v1002 = vrot.slane %v988, %v1001
        %v1003 = vcombine.low %v979, %v985
        %v1004 = vcombine.high %v979, %v985
        %v1006 = vunpack.c.l.s4 1983009808
        %v1007 = vunpack.c.0.s8 %v1006
        %v1008 = vlaneseq
        %v1009 = vshrl.u32 %v1008, 7
        %v1010 = vsub.s32 %v1007, %v1009
        %v1011 = vrot.slane %v1003, %v1010
        %v1013 = vunpack.c.l.s4 1983009808
        %v1014 = vunpack.c.0.s8 %v1013
        %v1015 = vlaneseq
        %v1016 = vshrl.u32 %v1015, 7
        %v1017 = vsub.s32 %v1014, %v1016
        %v1018 = vrot.slane %v1004, %v1017
        %v1019 = vcombine.low %v995, %v1011
        %v1020 = vcombine.high %v995, %v1011
        %v1022 = vunpack.c.l.s4 1934713408
        %v1023 = vunpack.c.0.s8 %v1022
        %v1024 = vlaneseq
        %v1025 = vshrl.u32 %v1024, 7
        %v1026 = vsub.s32 %v1023, %v1025
        %v1027 = vrot.slane %v1019, %v1026
        %v1029 = vunpack.c.l.s4 1934713408
        %v1030 = vunpack.c.0.s8 %v1029
        %v1031 = vlaneseq
        %v1032 = vshrl.u32 %v1031, 7
        %v1033 = vsub.s32 %v1030, %v1032
        %v1034 = vrot.slane %v1020, %v1033
        %v1035 = vcombine.low %v1002, %v1018
        %v1036 = vcombine.high %v1002, %v1018
        %v1038 = vunpack.c.l.s4 1934713408
        %v1039 = vunpack.c.0.s8 %v1038
        %v1040 = vlaneseq
        %v1041 = vshrl.u32 %v1040, 7
        %v1042 = vsub.s32 %v1039, %v1041
        %v1043 = vrot.slane %v1035, %v1042
        %v1045 = vunpack.c.l.s4 1934713408
        %v1046 = vunpack.c.0.s8 %v1045
        %v1047 = vlaneseq
        %v1048 = vshrl.u32 %v1047, 7
        %v1049 = vsub.s32 %v1046, %v1048
        %v1050 = vrot.slane %v1036, %v1049
        %v1051 = vcombine.high %v1027, 0.0
        %v1052 = vcombine.high %v1034, 0.0
        %v1053 = vcombine.high %v1043, 0.0
        %v1054 = vcombine.high %v1050, 0.0
        %v1055 = vcombine.low %v1027, %v1034
        %v1057 = vunpack.c.l.s4 1983009808
        %v1058 = vunpack.c.0.s8 %v1057
        %v1059 = vlaneseq
        %v1060 = vshrl.u32 %v1059, 7
        %v1061 = vsub.s32 %v1058, %v1060
        %v1062 = vrot.slane %v1055, %v1061
        %v1063 = vcombine.low %v1051, %v1052
        %v1065 = vunpack.c.l.s4 1983009808
        %v1066 = vunpack.c.0.s8 %v1065
        %v1067 = vlaneseq
        %v1068 = vshrl.u32 %v1067, 7
        %v1069 = vsub.s32 %v1066, %v1068
        %v1070 = vrot.slane %v1063, %v1069
        %v1071 = vcombine.low %v1043, %v1050
        %v1073 = vunpack.c.l.s4 1983009808
        %v1074 = vunpack.c.0.s8 %v1073
        %v1075 = vlaneseq
        %v1076 = vshrl.u32 %v1075, 7
        %v1077 = vsub.s32 %v1074, %v1076
        %v1078 = vrot.slane %v1071, %v1077
        %v1079 = vcombine.low %v1053, %v1054
        %v1081 = vunpack.c.l.s4 1983009808
        %v1082 = vunpack.c.0.s8 %v1081
        %v1083 = vlaneseq
        %v1084 = vshrl.u32 %v1083, 7
        %v1085 = vsub.s32 %v1082, %v1084
        %v1086 = vrot.slane %v1079, %v1085
        %v1087 = vcombine.low %v1062, %v1070
        %v1088 = vcombine.high %v1062, %v1070
        %v1090 = vunpack.c.l.s4 1934713408
        %v1091 = vunpack.c.0.s8 %v1090
        %v1092 = vlaneseq
        %v1093 = vshrl.u32 %v1092, 7
        %v1094 = vsub.s32 %v1091, %v1093
        %v1095 = vrot.slane %v1087, %v1094
        %v1097 = vunpack.c.l.s4 1934713408
        %v1098 = vunpack.c.0.s8 %v1097
        %v1099 = vlaneseq
        %v1100 = vshrl.u32 %v1099, 7
        %v1101 = vsub.s32 %v1098, %v1100
        %v1102 = vrot.slane %v1088, %v1101
        %v1103 = vcombine.low %v1078, %v1086
        %v1104 = vcombine.high %v1078, %v1086
        %v1106 = vunpack.c.l.s4 1934713408
        %v1107 = vunpack.c.0.s8 %v1106
        %v1108 = vlaneseq
        %v1109 = vshrl.u32 %v1108, 7
        %v1110 = vsub.s32 %v1107, %v1109
        %v1111 = vrot.slane %v1103, %v1110
        %v1113 = vunpack.c.l.s4 1934713408
        %v1114 = vunpack.c.0.s8 %v1113
        %v1115 = vlaneseq
        %v1116 = vshrl.u32 %v1115, 7
        %v1117 = vsub.s32 %v1114, %v1116
        %v1118 = vrot.slane %v1104, %v1117
        %v1119 = vcombine.low %v1095, %v1111
        %v1120 = vcombine.high %v1095, %v1111
        %v1121 = vcombine.low %v1102, %v1118
        %v1122 = vcombine.high %v1102, %v1118
        %1123 = vst.msk [vmem:[%s539] sm:$0xff] %vm972, %v1119
        %1124 = vst.msk [vmem:[%s539 + $0x8] sm:$0xff] %vm972, %v1120
        %1125 = vst.msk [vmem:[%s539 + $0x10] sm:$0xff] %vm972, %v1121
        %1126 = vst.msk [vmem:[%s539 + $0x18] sm:$0xff] %vm972, %v1122
        %1128 = vrot.lane.b32.xlu0 %v822, 120
        %v1129 = vpop.permute.xlu0 %1128
        %1131 = vrot.lane.b32.xlu0 %v822, 112
        %v1132 = vpop.permute.xlu0 %1131
        %1134 = vrot.lane.b32.xlu0 %v822, 104
        %v1135 = vpop.permute.xlu0 %1134
        %v1137 = vcombine.low %v822, %v1132
        %v1138 = vcombine.high %v822, %v1132
        %v1140 = vunpack.c.l.s4 1983009808
        %v1141 = vunpack.c.0.s8 %v1140
        %v1142 = vlaneseq
        %v1143 = vshrl.u32 %v1142, 7
        %v1144 = vsub.s32 %v1141, %v1143
        %v1145 = vrot.slane %v1137, %v1144
        %v1147 = vunpack.c.l.s4 1983009808
        %v1148 = vunpack.c.0.s8 %v1147
        %v1149 = vlaneseq
        %v1150 = vshrl.u32 %v1149, 7
        %v1151 = vsub.s32 %v1148, %v1150
        %v1152 = vrot.slane %v1138, %v1151
        %v1153 = vcombine.low %v1129, %v1135
        %v1154 = vcombine.high %v1129, %v1135
        %v1156 = vunpack.c.l.s4 1983009808
        %v1157 = vunpack.c.0.s8 %v1156
        %v1158 = vlaneseq
        %v1159 = vshrl.u32 %v1158, 7
        %v1160 = vsub.s32 %v1157, %v1159
        %v1161 = vrot.slane %v1153, %v1160
        %v1163 = vunpack.c.l.s4 1983009808
        %v1164 = vunpack.c.0.s8 %v1163
        %v1165 = vlaneseq
        %v1166 = vshrl.u32 %v1165, 7
        %v1167 = vsub.s32 %v1164, %v1166
        %v1168 = vrot.slane %v1154, %v1167
        %v1169 = vcombine.low %v1145, %v1161
        %v1170 = vcombine.high %v1145, %v1161
        %v1172 = vunpack.c.l.s4 1934713408
        %v1173 = vunpack.c.0.s8 %v1172
        %v1174 = vlaneseq
        %v1175 = vshrl.u32 %v1174, 7
        %v1176 = vsub.s32 %v1173, %v1175
        %v1177 = vrot.slane %v1169, %v1176
        %v1179 = vunpack.c.l.s4 1934713408
        %v1180 = vunpack.c.0.s8 %v1179
        %v1181 = vlaneseq
        %v1182 = vshrl.u32 %v1181, 7
        %v1183 = vsub.s32 %v1180, %v1182
        %v1184 = vrot.slane %v1170, %v1183
        %v1185 = vcombine.low %v1152, %v1168
        %v1186 = vcombine.high %v1152, %v1168
        %v1188 = vunpack.c.l.s4 1934713408
        %v1189 = vunpack.c.0.s8 %v1188
        %v1190 = vlaneseq
        %v1191 = vshrl.u32 %v1190, 7
        %v1192 = vsub.s32 %v1189, %v1191
        %v1193 = vrot.slane %v1185, %v1192
        %v1195 = vunpack.c.l.s4 1934713408
        %v1196 = vunpack.c.0.s8 %v1195
        %v1197 = vlaneseq
        %v1198 = vshrl.u32 %v1197, 7
        %v1199 = vsub.s32 %v1196, %v1198
        %v1200 = vrot.slane %v1186, %v1199
        %v1201 = vcombine.high %v1177, 0.0
        %v1202 = vcombine.high %v1184, 0.0
        %v1203 = vcombine.high %v1193, 0.0
        %v1204 = vcombine.high %v1200, 0.0
        %v1205 = vcombine.low %v1177, %v1184
        %v1207 = vunpack.c.l.s4 1983009808
        %v1208 = vunpack.c.0.s8 %v1207
        %v1209 = vlaneseq
        %v1210 = vshrl.u32 %v1209, 7
        %v1211 = vsub.s32 %v1208, %v1210
        %v1212 = vrot.slane %v1205, %v1211
        %v1213 = vcombine.low %v1201, %v1202
        %v1215 = vunpack.c.l.s4 1983009808
        %v1216 = vunpack.c.0.s8 %v1215
        %v1217 = vlaneseq
        %v1218 = vshrl.u32 %v1217, 7
        %v1219 = vsub.s32 %v1216, %v1218
        %v1220 = vrot.slane %v1213, %v1219
        %v1221 = vcombine.low %v1193, %v1200
        %v1223 = vunpack.c.l.s4 1983009808
        %v1224 = vunpack.c.0.s8 %v1223
        %v1225 = vlaneseq
        %v1226 = vshrl.u32 %v1225, 7
        %v1227 = vsub.s32 %v1224, %v1226
        %v1228 = vrot.slane %v1221, %v1227
        %v1229 = vcombine.low %v1203, %v1204
        %v1231 = vunpack.c.l.s4 1983009808
        %v1232 = vunpack.c.0.s8 %v1231
        %v1233 = vlaneseq
        %v1234 = vshrl.u32 %v1233, 7
        %v1235 = vsub.s32 %v1232, %v1234
        %v1236 = vrot.slane %v1229, %v1235
        %v1237 = vcombine.low %v1212, %v1220
        %v1238 = vcombine.high %v1212, %v1220
        %v1240 = vunpack.c.l.s4 1934713408
        %v1241 = vunpack.c.0.s8 %v1240
        %v1242 = vlaneseq
        %v1243 = vshrl.u32 %v1242, 7
        %v1244 = vsub.s32 %v1241, %v1243
        %v1245 = vrot.slane %v1237, %v1244
        %v1247 = vunpack.c.l.s4 1934713408
        %v1248 = vunpack.c.0.s8 %v1247
        %v1249 = vlaneseq
        %v1250 = vshrl.u32 %v1249, 7
        %v1251 = vsub.s32 %v1248, %v1250
        %v1252 = vrot.slane %v1238, %v1251
        %v1253 = vcombine.low %v1228, %v1236
        %v1254 = vcombine.high %v1228, %v1236
        %v1256 = vunpack.c.l.s4 1934713408
        %v1257 = vunpack.c.0.s8 %v1256
        %v1258 = vlaneseq
        %v1259 = vshrl.u32 %v1258, 7
        %v1260 = vsub.s32 %v1257, %v1259
        %v1261 = vrot.slane %v1253, %v1260
        %v1263 = vunpack.c.l.s4 1934713408
        %v1264 = vunpack.c.0.s8 %v1263
        %v1265 = vlaneseq
        %v1266 = vshrl.u32 %v1265, 7
        %v1267 = vsub.s32 %v1264, %v1266
        %v1268 = vrot.slane %v1254, %v1267
        %v1269 = vcombine.low %v1245, %v1261
        %v1270 = vcombine.high %v1245, %v1261
        %v1271 = vcombine.low %v1252, %v1268
        %v1272 = vcombine.high %v1252, %v1268
        %1273 = vst.msk [vmem:[%s546] sm:$0xff] %vm972, %v1269
        %1274 = vst.msk [vmem:[%s546 + $0x8] sm:$0xff] %vm972, %v1270
        %1275 = vst.msk [vmem:[%s546 + $0x10] sm:$0xff] %vm972, %v1271
        %1276 = vst.msk [vmem:[%s546 + $0x18] sm:$0xff] %vm972, %v1272
        %s1277 = sand.u32 %s254, 1
        %s1278 = scalar_lea.sflag [#allocation4], %s1277
        %s1279 = sand.u32 %s254, 1
        %s1280 = smul.addr %s1279, 32
        %s1281 = scalar_lea.vmem [#allocation17], %s1280
        %s1282 = sand.u32 %s36, 1
        %s1283 = scalar_lea.sflag [#allocation19], %s1282
        %s1284 = sand.u32 %s282, 1
        %s1285 = smul.addr %s1284, 32
        %s1286 = scalar_lea.vmem [#allocation18], %s1285
        %s1287 = sand.u32 %s36, 1
        %s1288 = scalar_lea.sflag [#allocation19], %s1287
        %s1289 = sand.u32 %s310, 1
        %s1290 = smul.addr %s1289, 32
        %s1291 = scalar_lea.vmem [#allocation20], %s1290
        // Predicated region
        $region93: #{tpu_custom_call.1} parent=55 // pred_check
          %p1292 = pneg %p264
        $region94: #{tpu_custom_call.1} parent=55 // pred_check_branch
          %1294 = sbr.rel (%p1292) target = $region96
        $region95: #{tpu_custom_call.1} parent=55 // pred_region
          %s1296 = ssub.s32 512, 512
          %1297 = vsyncadd %s1278, %s1296
          %s1298 = smul.addr %s40, 4
          %s1299 = sadd.s32 %s41, %s1298
          %s1300 = smul.addr %s1299, 128
          %s1301 = scalar_lea.hbm %s9, %s1300
          %s1302 = sshll.u32 %s1281, 4
          %s1303 = int_to_ptr.vmem [resolvable:$true] %s1302
          %1308 = dma.vmem_to_hbm [thread:$0]  %s1303, 512, %s1301, %s1278, 128, 128, 8
        $region96: #{tpu_custom_call.1} parent=55 // pred_fallthru
          _
        // Predicated region
        $region97: #{tpu_custom_call.1} parent=55 // pred_check
          %p1309 = pneg %p292
        $region98: #{tpu_custom_call.1} parent=55 // pred_check_branch
          %1311 = sbr.rel (%p1309) target = $region100
        $region99: #{tpu_custom_call.1} parent=55 // pred_region
          %s1313 = ssub.s32 512, 512
          %1314 = vsyncadd %s1283, %s1313
          %s1315 = smul.addr %s40, 4
          %s1316 = sadd.s32 %s41, %s1315
          %s1317 = smul.addr %s1316, 128
          %s1318 = scalar_lea.hbm %s10, %s1317
          %s1319 = sshll.u32 %s1286, 4
          %s1320 = int_to_ptr.vmem [resolvable:$true] %s1319
          %1325 = dma.vmem_to_hbm [thread:$0]  %s1320, 512, %s1318, %s1283, 128, 128, 8
        $region100: #{tpu_custom_call.1} parent=55 // pred_fallthru
          _
        // Predicated region
        $region101: #{tpu_custom_call.1} parent=55 // pred_check
          %p1326 = pneg %p320
        $region102: #{tpu_custom_call.1} parent=55 // pred_check_branch
          %1328 = sbr.rel (%p1326) target = $region104
        $region103: #{tpu_custom_call.1} parent=55 // pred_region
          %s1330 = ssub.s32 512, 512
          %1331 = vsyncadd %s1288, %s1330
          %s1332 = smul.addr %s40, 4
          %s1333 = sadd.s32 %s41, %s1332
          %s1334 = smul.addr %s1333, 128
          %s1335 = scalar_lea.hbm %s11, %s1334
          %s1336 = sshll.u32 %s1291, 4
          %s1337 = int_to_ptr.vmem [resolvable:$true] %s1336
          %1342 = dma.vmem_to_hbm [thread:$0]  %s1337, 512, %s1335, %s1288, 128, 128, 8
        $region104: #{tpu_custom_call.1} parent=55 // pred_fallthru
          _
      $region56: #{tpu_custom_call.1} parent=5 // pred_fallthru
        _
      %p1343 = scmp.le.s32.totalorder 2, %s31
      // Predicated region
      $region105: #{tpu_custom_call.1} parent=5 // pred_check
        %p1344 = pneg %p1343
      $region106: #{tpu_custom_call.1} parent=5 // pred_check_branch
        %1346 = sbr.rel (%p1344) target = $region108
      $region107: #{tpu_custom_call.1} parent=5 // pred_region
        %s1347 = ssub.s32 %s31, 2
        // Predicated region
        $region109: #{tpu_custom_call.1} parent=107 // pred_check
          %p1348 = pneg %p270
        $region110: #{tpu_custom_call.1} parent=107 // pred_check_branch
          %1350 = sbr.rel (%p1348) target = $region112
        $region111: #{tpu_custom_call.1} parent=107 // pred_region
          %s1351 = sand.u32 %s255, 1
          %s1352 = scalar_lea.sflag [#allocation4], %s1351
          %s1353 = sand.u32 %s255, 1
          %s1354 = smul.addr %s1353, 32
          %s1355 = scalar_lea.vmem [#allocation17], %s1354
          %1356 = dma.done %s1352, 512
        $region112: #{tpu_custom_call.1} parent=107 // pred_fallthru
          _
        // Predicated region
        $region113: #{tpu_custom_call.1} parent=107 // pred_check
          %p1357 = pneg %p298
        $region114: #{tpu_custom_call.1} parent=107 // pred_check_branch
          %1359 = sbr.rel (%p1357) target = $region116
        $region115: #{tpu_custom_call.1} parent=107 // pred_region
          %s1360 = sand.u32 %s37, 1
          %s1361 = scalar_lea.sflag [#allocation19], %s1360
          %s1362 = sand.u32 %s283, 1
          %s1363 = smul.addr %s1362, 32
          %s1364 = scalar_lea.vmem [#allocation18], %s1363
          %1365 = dma.done %s1361, 512
        $region116: #{tpu_custom_call.1} parent=107 // pred_fallthru
          _
        // Predicated region
        $region117: #{tpu_custom_call.1} parent=107 // pred_check
          %p1366 = pneg %p326
        $region118: #{tpu_custom_call.1} parent=107 // pred_check_branch
          %1368 = sbr.rel (%p1366) target = $region120
        $region119: #{tpu_custom_call.1} parent=107 // pred_region
          %s1369 = sand.u32 %s37, 1
          %s1370 = scalar_lea.sflag [#allocation19], %s1369
          %s1371 = sand.u32 %s311, 1
          %s1372 = smul.addr %s1371, 32
          %s1373 = scalar_lea.vmem [#allocation20], %s1372
          %1374 = dma.done %s1370, 512
        $region120: #{tpu_custom_call.1} parent=107 // pred_fallthru
          _
      $region108: #{tpu_custom_call.1} parent=5 // pred_fallthru
        _
    $region6: #{tpu_custom_call.1} parent=1 // loop_footer
      %s35 = sadd.s32 1, %s31
    $region7: #{tpu_custom_call.1} parent=1 // loop_footer_branch
      %30 = sbr.rel target = $region3
    $region8: #{tpu_custom_call.1} parent=1 // loop_exit
      _
    %1375 = vsyncpa [#allocation3], 1
    %s1376 = scalar_lea.sflag [#allocation3], 1
    %1377 = vsyncpa %s1376, 1
    %1378 = vsyncpa [#allocation6], 1
    %1379 = vsyncpa [#allocation9], 1
    %1380 = vsyncpa [#allocation12], 1
    %1381 = vsyncpa [#allocation15], 1
    %1382 = vsyncpa [#allocation4], 1
    %s1383 = scalar_lea.sflag [#allocation4], 1
    %1384 = vsyncpa %s1383, 1
    %1385 = vsyncpa [#allocation19], 1
    %s1386 = scalar_lea.sflag [#allocation19], 1
    %1387 = vsyncpa %s1386, 1

</llo_original>
